<compile_context>
chip_gen: v7x
topology: tpu7x:2x2x1
jax: 0.10.0
libtpu: 0.0.40
codegen_flags: <defaults>
</compile_context>

<pallas_src>
import math

import jax
import jax.numpy as jnp
from jax.experimental import pallas as pl
from jax.experimental.pallas import tpu as pltpu


# ----------------------------------------------------------------------------
# Kernels
# ----------------------------------------------------------------------------
def ae_fwd_resident_kernel(x_ref, bdec_ref, wencT_ref, benc_ref, wdecT_ref,
                           z_ref, xprime_ref):
    """Weights VMEM-resident path. grid = (batch_tiles,).

    x_ref:      (TB, D)  input dtype
    bdec_ref:   (1, D)   f32
    wencT_ref:  (D, H)   compute dtype   (pre-transposed on host)
    benc_ref:   (1, H)   f32
    wdecT_ref:  (H, D)   compute dtype   (pre-transposed on host)
    z_ref:      (TB, H)  z dtype
    xprime_ref: (TB, D)  out dtype
    """
    b_dec = bdec_ref[...]                                         # (1, D) f32
    # Center in f32, then drop to the MXU compute dtype (= weight dtype).
    x_c = (x_ref[...].astype(jnp.float32) - b_dec).astype(wencT_ref.dtype)

    # Encoder: (TB, D) @ (D, H) -> (TB, H), f32 accumulation on the MXU.
    pre = jnp.dot(x_c, wencT_ref[...],
                  preferred_element_type=jnp.float32) + benc_ref[...]
    z = jnp.maximum(pre, 0.0)
    z_ref[...] = z.astype(z_ref.dtype)

    # Decoder: (TB, H) @ (H, D) -> (TB, D).
    xprime = jnp.dot(z.astype(wdecT_ref.dtype), wdecT_ref[...],
                     preferred_element_type=jnp.float32) + b_dec
    xprime_ref[...] = xprime.astype(xprime_ref.dtype)


def make_ae_fwd_tiled_kernel(acc_in_output):
    """Hidden-tiled path. grid = (batch_tiles, hidden_tiles); hidden axis is a
    reduction for xprime. If acc_in_output, partial sums accumulate directly
    into xprime_ref (f32 output); otherwise into a f32 scratch."""

    def kernel(x_ref, bdec_ref, wencT_ref, benc_ref, wdecT_ref,
               z_ref, xprime_ref, xc_ref, *maybe_acc):
        j = pl.program_id(1)
        acc_ref = xprime_ref if acc_in_output else maybe_acc[0]
        b_dec = bdec_ref[...]                                     # (1, D) f32

        @pl.when(j == 0)
        def _():
            # Hoisted once per batch tile: center + cast to compute dtype.
            xc_ref[...] = (x_ref[...].astype(jnp.float32) - b_dec
                           ).astype(xc_ref.dtype)
            if acc_in_output:
                acc_ref[...] = jnp.broadcast_to(b_dec, acc_ref.shape)
            else:
                acc_ref[...] = jnp.zeros_like(acc_ref)

        # Encoder slice: (TB, D) @ (D, TH) -> (TB, TH).
        pre = jnp.dot(xc_ref[...], wencT_ref[...],
                      preferred_element_type=jnp.float32) + benc_ref[...]
        z = jnp.maximum(pre, 0.0)
        z_ref[...] = z.astype(z_ref.dtype)

        # Decoder partial sum: (TB, TH) @ (TH, D) -> (TB, D).
        acc_ref[...] += jnp.dot(z.astype(wdecT_ref.dtype), wdecT_ref[...],
                                preferred_element_type=jnp.float32)

        if not acc_in_output:
            @pl.when(j == pl.num_programs(1) - 1)
            def _():
                xprime_ref[...] = (acc_ref[...] + b_dec).astype(xprime_ref.dtype)

    return kernel


# ----------------------------------------------------------------------------
# Wrapper
# ----------------------------------------------------------------------------
def _pick_hidden_tile(hidden_dim, hidden_tile):
    """Largest 128-multiple divisor of hidden_dim that is <= hidden_tile."""
    if hidden_dim % 128 != 0:
        return hidden_dim                       # full-extent block (always legal)
    th = min(hidden_tile, hidden_dim)
    th = (th // 128) * 128
    while th >= 128 and hidden_dim % th != 0:
        th -= 128
    return th if th >= 128 else hidden_dim


def ae_forward(x, w_enc, b_enc, w_dec, b_dec, *,
               compute_dtype=jnp.bfloat16,
               batch_tile=512,
               hidden_tile=512,
               z_dtype=None,
               weight_resident_bytes=16 * 1024 * 1024):
    """Mirrors AE.forward: returns (x, z, xprime).

    x:      (B, input_dim)
    w_enc:  (hidden_dim, input_dim)   -- PyTorch nn.Linear weight layout
    b_enc:  (hidden_dim,)
    w_dec:  (input_dim, hidden_dim)
    b_dec:  (input_dim,)
    """
    B, input_dim = x.shape
    hidden_dim = w_enc.shape[0]
    out_dtype = x.dtype
    z_dtype = out_dtype if z_dtype is None else z_dtype

    c_item = jnp.dtype(compute_dtype).itemsize
    x_item = jnp.dtype(x.dtype).itemsize
    z_item = jnp.dtype(z_dtype).itemsize
    o_item = jnp.dtype(out_dtype).itemsize

    # --- batch tiling (pad B up to a multiple of the tile only if needed) ----
    if B > batch_tile:
        TB = batch_tile
        nb = pl.cdiv(B, TB)
        Bp = nb * TB
    else:
        TB, nb, Bp = B, 1, B
    x_in = x if Bp == B else jnp.pad(x, ((0, Bp - B), (0, 0)))

    # --- one-time host-side weight prep (transpose + cast) --------------------
    w_encT = w_enc.T.astype(compute_dtype)          # (D, H)
    w_decT = w_dec.T.astype(compute_dtype)          # (H, D)
    b_enc_2d = b_enc.reshape(1, hidden_dim).astype(jnp.float32)
    b_dec_2d = b_dec.reshape(1, input_dim).astype(jnp.float32)

    weight_bytes = 2 * input_dim * hidden_dim * c_item
    resident = weight_bytes <= weight_resident_bytes
    flops = 4 * Bp * input_dim * hidden_dim
    bias_bytes = (input_dim + hidden_dim) * 4

    if resident:
        # Weights DMAed once (constant index_map) and kept in VMEM.
        vmem_est = (2 * TB * input_dim * x_item           # x (double-buffered)
                    + 2 * weight_bytes                    # weights
                    + 2 * TB * hidden_dim * z_item        # z out
                    + 2 * TB * input_dim * o_item         # xprime out
                    + 4 * bias_bytes)
        bytes_accessed = (Bp * input_dim * x_item + weight_bytes + bias_bytes
                          + Bp * hidden_dim * z_item + Bp * input_dim * o_item)
        grid_spec = pltpu.PrefetchScalarGridSpec(
            num_scalar_prefetch=0,
            grid=(nb,),
            in_specs=[
                pl.BlockSpec((TB, input_dim), lambda i: (i, 0)),            # x
                pl.BlockSpec((1, input_dim), lambda i: (0, 0)),             # b_dec
                pl.BlockSpec((input_dim, hidden_dim), lambda i: (0, 0)),    # W_enc^T
                pl.BlockSpec((1, hidden_dim), lambda i: (0, 0)),            # b_enc
                pl.BlockSpec((hidden_dim, input_dim), lambda i: (0, 0)),    # W_dec^T
            ],
            out_specs=[
                pl.BlockSpec((TB, hidden_dim), lambda i: (i, 0)),           # z
                pl.BlockSpec((TB, input_dim), lambda i: (i, 0)),            # xprime
            ],
        )
        kernel = ae_fwd_resident_kernel
        dim_sem = ("parallel",)
    else:
        TH = _pick_hidden_tile(hidden_dim, hidden_tile)
        nh = hidden_dim // TH
        acc_in_output = jnp.dtype(out_dtype) == jnp.dtype(jnp.float32)
        vmem_est = (2 * TB * input_dim * x_item
                    + 2 * 2 * input_dim * TH * c_item     # weight tiles (x2 buf)
                    + 2 * TB * TH * z_item
                    + 2 * TB * input_dim * o_item
                    + TB * input_dim * c_item             # centered-x scratch
                    + (0 if acc_in_output else TB * input_dim * 4)
                    + 4 * bias_bytes)
        bytes_accessed = (Bp * input_dim * x_item
                          + nb * weight_bytes             # weights re-streamed per batch tile
                          + bias_bytes
                          + Bp * hidden_dim * z_item + Bp * input_dim * o_item)
        scratch_shapes = [pltpu.VMEM((TB, input_dim), compute_dtype)]
        if not acc_in_output:
            scratch_shapes.append(pltpu.VMEM((TB, input_dim), jnp.float32))
        grid_spec = pltpu.PrefetchScalarGridSpec(
            num_scalar_prefetch=0,
            grid=(nb, nh),
            in_specs=[
                pl.BlockSpec((TB, input_dim), lambda i, j: (i, 0)),         # x
                pl.BlockSpec((1, input_dim), lambda i, j: (0, 0)),          # b_dec
                pl.BlockSpec((input_dim, TH), lambda i, j: (0, j)),         # W_enc^T
                pl.BlockSpec((1, TH), lambda i, j: (0, j)),                 # b_enc
                pl.BlockSpec((TH, input_dim), lambda i, j: (j, 0)),         # W_dec^T
            ],
            out_specs=[
                pl.BlockSpec((TB, TH), lambda i, j: (i, j)),                # z
                pl.BlockSpec((TB, input_dim), lambda i, j: (i, 0)),         # xprime
            ],
            scratch_shapes=scratch_shapes,
        )
        kernel = make_ae_fwd_tiled_kernel(acc_in_output)
        dim_sem = ("parallel", "arbitrary")

    vmem_limit = int(min(max(vmem_est * 1.25, 32 * 1024 * 1024),
                         100 * 1024 * 1024))
    cost = pl.CostEstimate(flops=flops, transcendentals=0,
                           bytes_accessed=int(bytes_accessed))

    z, xprime = pl.pallas_call(
        kernel,
        out_shape=(
            jax.ShapeDtypeStruct((Bp, hidden_dim), z_dtype),
            jax.ShapeDtypeStruct((Bp, input_dim), out_dtype),
        ),
        grid_spec=grid_spec,
        compiler_params=pltpu.CompilerParams(
            dimension_semantics=dim_sem,
            vmem_limit_bytes=vmem_limit),
        cost_estimate=cost,
    )(x_in, b_dec_2d, w_encT, b_enc_2d, w_decT)

    if Bp != B:
        z = z[:B]
        xprime = xprime[:B]
    return x, z, xprime


def mse_loss(x, xprime):
    # AE.loss — plain reduction, not the hot path; done in JAX.
    return jnp.mean((xprime - x) ** 2)


if __name__ == "__main__":
    B, input_dim, hidden_dim = 256, 256, 512

    key = jax.random.PRNGKey(0)
    k_x, k_enc, k_dec, k_bdec = jax.random.split(key, 4)

    x = jax.random.normal(k_x, (B, input_dim), dtype=jnp.float32)

    # nn.Linear-style kaiming-uniform init; b_enc zeros as in __init__, b_dec
    # non-zero so the centering / decoder-bias paths are actually exercised.
    bound_enc = 1.0 / math.sqrt(input_dim)
    bound_dec = 1.0 / math.sqrt(hidden_dim)
    w_enc = jax.random.uniform(k_enc, (hidden_dim, input_dim),
                               minval=-bound_enc, maxval=bound_enc,
                               dtype=jnp.float32)
    w_dec = jax.random.uniform(k_dec, (input_dim, hidden_dim),
                               minval=-bound_dec, maxval=bound_dec,
                               dtype=jnp.float32)
    b_enc = jnp.zeros((hidden_dim,), dtype=jnp.float32)
    b_dec = 0.1 * jax.random.normal(k_bdec, (input_dim,), dtype=jnp.float32)

    # Pure-JAX reference (f32).
    z_ref = jnp.maximum((x - b_dec) @ w_enc.T + b_enc, 0.0)
    xp_ref = z_ref @ w_dec.T + b_dec

    # 1) Default fast path: weights resident in VMEM, bf16 MXU inputs.
    x_out, z_bf16, xp_bf16 = ae_forward(x, w_enc, b_enc, w_dec, b_dec)
    jax.block_until_ready((z_bf16, xp_bf16))
    assert jnp.allclose(z_bf16, z_ref, atol=1e-1, rtol=1e-1)
    assert jnp.allclose(xp_bf16, xp_ref, atol=1e-1, rtol=1e-1)

    # 2) f32 resident path — tight numerical check.
    _, z_f32, xp_f32 = ae_forward(x, w_enc, b_enc, w_dec, b_dec,
                                  compute_dtype=jnp.float32)
    jax.block_until_ready((z_f32, xp_f32))
    assert jnp.allclose(z_f32, z_ref, atol=1e-4, rtol=1e-4)
    assert jnp.allclose(xp_f32, xp_ref, atol=1e-4, rtol=1e-4)

    # 3) Forced hidden-tiled / multi-batch-tile path (f32, accumulate-in-output).
    _, z_t, xp_t = ae_forward(x, w_enc, b_enc, w_dec, b_dec,
                              compute_dtype=jnp.float32,
                              batch_tile=128, hidden_tile=128,
                              weight_resident_bytes=0)
    jax.block_until_ready((z_t, xp_t))
    assert jnp.allclose(z_t, z_ref, atol=1e-4, rtol=1e-4)
    assert jnp.allclose(xp_t, xp_ref, atol=1e-4, rtol=1e-4)

    # 4) Forced tiled path with bf16 input/output (exercises the scratch-acc).
    _, z_b, xp_b = ae_forward(x.astype(jnp.bfloat16), w_enc, b_enc, w_dec, b_dec,
                              batch_tile=128, hidden_tile=128,
                              weight_resident_bytes=0)
    jax.block_until_ready((z_b, xp_b))
    assert jnp.allclose(z_b.astype(jnp.float32), z_ref, atol=1e-1, rtol=1e-1)
    assert jnp.allclose(xp_b.astype(jnp.float32), xp_ref, atol=1e-1, rtol=1e-1)

    _ = jax.block_until_ready(mse_loss(x_out, xp_bf16))

    print("KERNEL_OK")
</pallas_src>

<mosaic_0001>
module attributes {stable_mosaic.version = 11 : i64} {
  func.func @ae_fwd_resident_kernel(%arg0: i32, %arg1: memref<256x256xf32, #tpu.memory_space<vmem>>, %arg2: memref<1x256xf32, #tpu.memory_space<vmem>>, %arg3: memref<256x512xbf16, #tpu.memory_space<vmem>>, %arg4: memref<1x512xf32, #tpu.memory_space<vmem>>, %arg5: memref<512x256xbf16, #tpu.memory_space<vmem>>, %arg6: memref<256x512xf32, #tpu.memory_space<vmem>>, %arg7: memref<256x256xf32, #tpu.memory_space<vmem>>) attributes {dimension_semantics = [#tpu.dimension_semantics<parallel>], iteration_bounds = array<i64: 1>, scalar_prefetch = 0 : i64, scratch_operands = 0 : i64, tpu.core_type = #tpu.core_type<tc>, window_params = [{transform_indices = @transform_0, window_bounds = array<i64: 256, 256>}, {pipeline_mode = #tpu.pipeline_mode<synchronous>, transform_indices = @transform_1, window_bounds = array<i64: 1, 256>}, {pipeline_mode = #tpu.pipeline_mode<synchronous>, transform_indices = @transform_2, window_bounds = array<i64: 256, 512>}, {pipeline_mode = #tpu.pipeline_mode<synchronous>, transform_indices = @transform_3, window_bounds = array<i64: 1, 512>}, {pipeline_mode = #tpu.pipeline_mode<synchronous>, transform_indices = @transform_4, window_bounds = array<i64: 512, 256>}, {transform_indices = @transform_5, window_bounds = array<i64: 256, 512>}, {transform_indices = @transform_6, window_bounds = array<i64: 256, 256>}]} {
    %c0 = arith.constant 0 : index
    %c0_0 = arith.constant 0 : index
    %0 = vector.load %arg2[%c0, %c0_0] : memref<1x256xf32, #tpu.memory_space<vmem>>, vector<1x256xf32>
    %c0_1 = arith.constant 0 : index
    %c0_2 = arith.constant 0 : index
    %1 = vector.load %arg1[%c0_1, %c0_2] : memref<256x256xf32, #tpu.memory_space<vmem>>, vector<256x256xf32>
    %2 = vector.broadcast %0 : vector<1x256xf32> to vector<256x256xf32>
    %3 = arith.subf %1, %2 : vector<256x256xf32>
    %4 = arith.truncf %3 : vector<256x256xf32> to vector<256x256xbf16>
    %c0_3 = arith.constant 0 : index
    %c0_4 = arith.constant 0 : index
    %5 = vector.load %arg3[%c0_3, %c0_4] : memref<256x512xbf16, #tpu.memory_space<vmem>>, vector<256x512xbf16>
    %cst = arith.constant dense<0.000000e+00> : vector<256x512xf32>
    %6 = tpu.matmul %4, %5, %cst {dimension_numbers = #tpu.dot_dimension_numbers<[1], [0], [0], [1], [0, 0, 1, 1], [], []>} : vector<256x256xbf16>, vector<256x512xbf16>, vector<256x512xf32> -> vector<256x512xf32>
    %c0_5 = arith.constant 0 : index
    %c0_6 = arith.constant 0 : index
    %7 = vector.load %arg4[%c0_5, %c0_6] : memref<1x512xf32, #tpu.memory_space<vmem>>, vector<1x512xf32>
    %8 = vector.broadcast %7 : vector<1x512xf32> to vector<256x512xf32>
    %9 = arith.addf %6, %8 : vector<256x512xf32>
    %cst_7 = arith.constant 0.000000e+00 : f32
    %10 = vector.broadcast %cst_7 : f32 to vector<256x512xf32>
    %11 = arith.maximumf %9, %10 : vector<256x512xf32>
    %c0_8 = arith.constant 0 : index
    %c0_9 = arith.constant 0 : index
    %12 = vector.load %arg6[%c0_8, %c0_9] : memref<256x512xf32, #tpu.memory_space<vmem>>, vector<256x512xf32>
    tpu.vector_store %arg6[%c0_8, %c0_9], %11 {strides = array<i32>} : memref<256x512xf32, #tpu.memory_space<vmem>>, vector<256x512xf32>,
    %13 = arith.truncf %11 : vector<256x512xf32> to vector<256x512xbf16>
    %c0_10 = arith.constant 0 : index
    %c0_11 = arith.constant 0 : index
    %14 = vector.load %arg5[%c0_10, %c0_11] : memref<512x256xbf16, #tpu.memory_space<vmem>>, vector<512x256xbf16>
    %cst_12 = arith.constant dense<0.000000e+00> : vector<256x256xf32>
    %15 = tpu.matmul %13, %14, %cst_12 {dimension_numbers = #tpu.dot_dimension_numbers<[1], [0], [0], [1], [0, 0, 1, 1], [], []>} : vector<256x512xbf16>, vector<512x256xbf16>, vector<256x256xf32> -> vector<256x256xf32>
    %16 = vector.broadcast %0 : vector<1x256xf32> to vector<256x256xf32>
    %17 = arith.addf %15, %16 : vector<256x256xf32>
    %c0_13 = arith.constant 0 : index
    %c0_14 = arith.constant 0 : index
    %18 = vector.load %arg7[%c0_13, %c0_14] : memref<256x256xf32, #tpu.memory_space<vmem>>, vector<256x256xf32>
    tpu.vector_store %arg7[%c0_13, %c0_14], %17 {strides = array<i32>} : memref<256x256xf32, #tpu.memory_space<vmem>>, vector<256x256xf32>,
    return
  }
  func.func @transform_0(%arg0: i32) -> (i32, i32) {
    %c0_i32 = arith.constant 0 : i32
    %c0_i32_0 = arith.constant 0 : i32
    return %arg0, %c0_i32 : i32, i32
  }
  func.func @transform_1(%arg0: i32) -> (i32, i32) {
    %c0_i32 = arith.constant 0 : i32
    %c0_i32_0 = arith.constant 0 : i32
    %c0_i32_1 = arith.constant 0 : i32
    return %c0_i32, %c0_i32_0 : i32, i32
  }
  func.func @transform_2(%arg0: i32) -> (i32, i32) {
    %c0_i32 = arith.constant 0 : i32
    %c0_i32_0 = arith.constant 0 : i32
    %c0_i32_1 = arith.constant 0 : i32
    return %c0_i32, %c0_i32_0 : i32, i32
  }
  func.func @transform_3(%arg0: i32) -> (i32, i32) {
    %c0_i32 = arith.constant 0 : i32
    %c0_i32_0 = arith.constant 0 : i32
    %c0_i32_1 = arith.constant 0 : i32
    return %c0_i32, %c0_i32_0 : i32, i32
  }
  func.func @transform_4(%arg0: i32) -> (i32, i32) {
    %c0_i32 = arith.constant 0 : i32
    %c0_i32_0 = arith.constant 0 : i32
    %c0_i32_1 = arith.constant 0 : i32
    return %c0_i32, %c0_i32_0 : i32, i32
  }
  func.func @transform_5(%arg0: i32) -> (i32, i32) {
    %c0_i32 = arith.constant 0 : i32
    %c0_i32_0 = arith.constant 0 : i32
    return %arg0, %c0_i32 : i32, i32
  }
  func.func @transform_6(%arg0: i32) -> (i32, i32) {
    %c0_i32 = arith.constant 0 : i32
    %c0_i32_0 = arith.constant 0 : i32
    return %arg0, %c0_i32 : i32, i32
  }
}

</mosaic_0001>

<llo_original>
// kernel: tpu_custom_call.1
$region0: #{tpu_custom_call.1}
  #allocation0 [shape = 'u32[]', space=smem, size = 0x4, offset = 0x4, fixed_abs, tag = 'smem constant byte address 0x4 - core index']
  #allocation1 [shape = 'u32[144,128]{1,0:T(1,128)}', space=vmem, size = 0x12000, scoped, tag = 'internal scratch']
  %s0 = inlined_call_operand.hbm [shape: f32[256,256], index: 0, kind: input, shape index: {}]
  %s1 = inlined_call_operand.vmem [shape: f32[1,256], index: 1, kind: input, shape index: {}]
  %s2 = inlined_call_operand.hbm [shape: bf16[256,512], index: 2, kind: input, shape index: {}]
  %s3 = inlined_call_operand.vmem [shape: f32[1,512], index: 3, kind: input, shape index: {}]
  %s4 = inlined_call_operand.hbm [shape: bf16[512,256], index: 4, kind: input, shape index: {}]
  %s5 = inlined_call_operand.hbm [shape: f32[256,512], index: 5, kind: output, shape index: {0}]
  %s6 = inlined_call_operand.hbm [shape: f32[256,256], index: 6, kind: output, shape index: {1}]
  %7 = xla_tuple %s5, %s6
  %s8 = sld [smem:[#allocation0]]
  $region50: #{tpu_custom_call.1} parent=0
    _
  %s10 = ssub.s32 1, %s8
  %s11 = scalar_select 0, %s10, %s8
  $region1: #{tpu_custom_call.1} parent=0
    #allocation2 [shape = 'u8[262144]{0}', space=vmem, size = 0x40000, scoped, tag = 'input window, operand 0, single buffered']
    #allocation3 [shape = 's32[1]{0}', space=sflag, size = 0x4, scoped, tag = 'scoped memory for tpu_custom_call.1']
    #allocation4 [shape = 's32[1]{0}', space=sflag, size = 0x4, scoped, tag = 'scoped memory for tpu_custom_call.1']
    #allocation5 [shape = 'u8[262144]{0}', space=vmem, size = 0x40000, scoped, tag = 'input window, operand 2, single buffered']
    #allocation6 [shape = 's32[1]{0}', space=sflag, size = 0x4, scoped, tag = 'scoped memory for tpu_custom_call.1']
    #allocation7 [shape = 'u8[262144]{0}', space=vmem, size = 0x40000, scoped, tag = 'input window, operand 4, single buffered']
    #allocation8 [shape = 'u8[524288]{0}', space=vmem, size = 0x80000, scoped, tag = 'output window, operand 0, single buffered']
    #allocation9 [shape = 'u8[262144]{0}', space=vmem, size = 0x40000, scoped, tag = 'output window, operand 1, single buffered']
    #allocation10 [shape = 's32[1]{0}', space=sflag, size = 0x4, scoped, tag = 'scoped memory for tpu_custom_call.1']
    %12 = vsyncpa [#allocation3], 0
    %13 = vsyncpa [#allocation6], 0
    %14 = vsyncpa [#allocation4], 0
    %15 = vsyncpa [#allocation10], 0
    // Predicated region
    $region2: #{tpu_custom_call.1} parent=1 // pred_check
      _
    $region3: #{tpu_custom_call.1} parent=1 // pred_check_branch
      %17 = sbr.rel (0) target = $region5
    $region4: #{tpu_custom_call.1} parent=1 // pred_region
      %s19 = ssub.s32 8192, 8192
      %20 = vsyncadd [#allocation3], %s19
      %s21 = sshll.u32 [#allocation2], 4
      %s22 = int_to_ptr.vmem [resolvable:$true] %s21
      %27 = dma.hbm_to_vmem [thread:$0]  %s0, 8192, %s22, [#allocation3], 256, 256, 16
    $region5: #{tpu_custom_call.1} parent=1 // pred_fallthru
      _
    // Predicated region
    $region6: #{tpu_custom_call.1} parent=1 // pred_check
      _
    $region7: #{tpu_custom_call.1} parent=1 // pred_check_branch
      %29 = sbr.rel (0) target = $region9
    $region8: #{tpu_custom_call.1} parent=1 // pred_region
      _
    $region9: #{tpu_custom_call.1} parent=1 // pred_fallthru
      _
    // Predicated region
    $region10: #{tpu_custom_call.1} parent=1 // pred_check
      _
    $region11: #{tpu_custom_call.1} parent=1 // pred_check_branch
      %31 = sbr.rel (0) target = $region13
    $region12: #{tpu_custom_call.1} parent=1 // pred_region
      %s33 = ssub.s32 8192, 8192
      %34 = vsyncadd [#allocation6], %s33
      %s35 = sshll.u32 [#allocation5], 4
      %s36 = int_to_ptr.vmem [resolvable:$true] %s35
      %41 = dma.hbm_to_vmem [thread:$0]  %s2, 8192, %s36, [#allocation6], 256, 256, 16
    $region13: #{tpu_custom_call.1} parent=1 // pred_fallthru
      _
    // Predicated region
    $region14: #{tpu_custom_call.1} parent=1 // pred_check
      _
    $region15: #{tpu_custom_call.1} parent=1 // pred_check_branch
      %43 = sbr.rel (0) target = $region17
    $region16: #{tpu_custom_call.1} parent=1 // pred_region
      _
    $region17: #{tpu_custom_call.1} parent=1 // pred_fallthru
      _
    // Predicated region
    $region18: #{tpu_custom_call.1} parent=1 // pred_check
      _
    $region19: #{tpu_custom_call.1} parent=1 // pred_check_branch
      %45 = sbr.rel (0) target = $region21
    $region20: #{tpu_custom_call.1} parent=1 // pred_region
      %s47 = ssub.s32 8192, 8192
      %48 = vsyncadd [#allocation6], %s47
      %s49 = sshll.u32 [#allocation7], 4
      %s50 = int_to_ptr.vmem [resolvable:$true] %s49
      %55 = dma.hbm_to_vmem [thread:$0]  %s4, 8192, %s50, [#allocation6], 128, 128, 8
    $region21: #{tpu_custom_call.1} parent=1 // pred_fallthru
      _
    // Predicated region
    $region22: #{tpu_custom_call.1} parent=1 // pred_check
      _
    $region23: #{tpu_custom_call.1} parent=1 // pred_check_branch
      %57 = sbr.rel (0) target = $region25
    $region24: #{tpu_custom_call.1} parent=1 // pred_region
      %58 = dma.done [#allocation3], 8192
    $region25: #{tpu_custom_call.1} parent=1 // pred_fallthru
      _
    // Predicated region
    $region26: #{tpu_custom_call.1} parent=1 // pred_check
      _
    $region27: #{tpu_custom_call.1} parent=1 // pred_check_branch
      %60 = sbr.rel (0) target = $region29
    $region28: #{tpu_custom_call.1} parent=1 // pred_region
      %61 = dma.done [#allocation6], 8192
    $region29: #{tpu_custom_call.1} parent=1 // pred_fallthru
      _
    // Predicated region
    $region30: #{tpu_custom_call.1} parent=1 // pred_check
      _
    $region31: #{tpu_custom_call.1} parent=1 // pred_check_branch
      %63 = sbr.rel (0) target = $region33
    $region32: #{tpu_custom_call.1} parent=1 // pred_region
      %64 = dma.done [#allocation6], 8192
    $region33: #{tpu_custom_call.1} parent=1 // pred_fallthru
      _
    %v65 = vld [vmem:[%s1] sm:$0x3]
    %v66 = vld [vmem:[#allocation2] sm:$0xff]
    %v67 = vld [vmem:[#allocation2 + $0x8] sm:$0xff]
    %v68 = vld [vmem:[#allocation2 + $0x10] sm:$0xff]
    %v69 = vld [vmem:[#allocation2 + $0x18] sm:$0xff]
    %v70 = vld [vmem:[#allocation2 + $0x20] sm:$0xff]
    %v71 = vld [vmem:[#allocation2 + $0x28] sm:$0xff]
    %v72 = vld [vmem:[#allocation2 + $0x30] sm:$0xff]
    %v73 = vld [vmem:[#allocation2 + $0x38] sm:$0xff]
    %v74 = vld [vmem:[#allocation2 + $0x40] sm:$0xff]
    %v75 = vld [vmem:[#allocation2 + $0x48] sm:$0xff]
    %v76 = vld [vmem:[#allocation2 + $0x50] sm:$0xff]
    %v77 = vld [vmem:[#allocation2 + $0x58] sm:$0xff]
    %v78 = vld [vmem:[#allocation2 + $0x60] sm:$0xff]
    %v79 = vld [vmem:[#allocation2 + $0x68] sm:$0xff]
    %v80 = vld [vmem:[#allocation2 + $0x70] sm:$0xff]
    %v81 = vld [vmem:[#allocation2 + $0x78] sm:$0xff]
    %v82 = vld [vmem:[#allocation2 + $0x80] sm:$0xff]
    %v83 = vld [vmem:[#allocation2 + $0x88] sm:$0xff]
    %v84 = vld [vmem:[#allocation2 + $0x90] sm:$0xff]
    %v85 = vld [vmem:[#allocation2 + $0x98] sm:$0xff]
    %v86 = vld [vmem:[#allocation2 + $0xa0] sm:$0xff]
    %v87 = vld [vmem:[#allocation2 + $0xa8] sm:$0xff]
    %v88 = vld [vmem:[#allocation2 + $0xb0] sm:$0xff]
    %v89 = vld [vmem:[#allocation2 + $0xb8] sm:$0xff]
    %v90 = vld [vmem:[#allocation2 + $0xc0] sm:$0xff]
    %v91 = vld [vmem:[#allocation2 + $0xc8] sm:$0xff]
    %v92 = vld [vmem:[#allocation2 + $0xd0] sm:$0xff]
    %v93 = vld [vmem:[#allocation2 + $0xd8] sm:$0xff]
    %v94 = vld [vmem:[#allocation2 + $0xe0] sm:$0xff]
    %v95 = vld [vmem:[#allocation2 + $0xe8] sm:$0xff]
    %v96 = vld [vmem:[#allocation2 + $0xf0] sm:$0xff]
    %v97 = vld [vmem:[#allocation2 + $0xf8] sm:$0xff]
    %v98 = vld [vmem:[#allocation2 + $0x100] sm:$0xff]
    %v99 = vld [vmem:[#allocation2 + $0x108] sm:$0xff]
    %v100 = vld [vmem:[#allocation2 + $0x110] sm:$0xff]
    %v101 = vld [vmem:[#allocation2 + $0x118] sm:$0xff]
    %v102 = vld [vmem:[#allocation2 + $0x120] sm:$0xff]
    %v103 = vld [vmem:[#allocation2 + $0x128] sm:$0xff]
    %v104 = vld [vmem:[#allocation2 + $0x130] sm:$0xff]
    %v105 = vld [vmem:[#allocation2 + $0x138] sm:$0xff]
    %v106 = vld [vmem:[#allocation2 + $0x140] sm:$0xff]
    %v107 = vld [vmem:[#allocation2 + $0x148] sm:$0xff]
    %v108 = vld [vmem:[#allocation2 + $0x150] sm:$0xff]
    %v109 = vld [vmem:[#allocation2 + $0x158] sm:$0xff]
    %v110 = vld [vmem:[#allocation2 + $0x160] sm:$0xff]
    %v111 = vld [vmem:[#allocation2 + $0x168] sm:$0xff]
    %v112 = vld [vmem:[#allocation2 + $0x170] sm:$0xff]
    %v113 = vld [vmem:[#allocation2 + $0x178] sm:$0xff]
    %v114 = vld [vmem:[#allocation2 + $0x180] sm:$0xff]
    %v115 = vld [vmem:[#allocation2 + $0x188] sm:$0xff]
    %v116 = vld [vmem:[#allocation2 + $0x190] sm:$0xff]
    %v117 = vld [vmem:[#allocation2 + $0x198] sm:$0xff]
    %v118 = vld [vmem:[#allocation2 + $0x1a0] sm:$0xff]
    %v119 = vld [vmem:[#allocation2 + $0x1a8] sm:$0xff]
    %v120 = vld [vmem:[#allocation2 + $0x1b0] sm:$0xff]
    %v121 = vld [vmem:[#allocation2 + $0x1b8] sm:$0xff]
    %v122 = vld [vmem:[#allocation2 + $0x1c0] sm:$0xff]
    %v123 = vld [vmem:[#allocation2 + $0x1c8] sm:$0xff]
    %v124 = vld [vmem:[#allocation2 + $0x1d0] sm:$0xff]
    %v125 = vld [vmem:[#allocation2 + $0x1d8] sm:$0xff]
    %v126 = vld [vmem:[#allocation2 + $0x1e0] sm:$0xff]
    %v127 = vld [vmem:[#allocation2 + $0x1e8] sm:$0xff]
    %v128 = vld [vmem:[#allocation2 + $0x1f0] sm:$0xff]
    %v129 = vld [vmem:[#allocation2 + $0x1f8] sm:$0xff]
    %v131 = vlaneseq
    %v132 = vshrl.u32 %v131, 7
    %v133 = vsub.s32 0, %v132
    %v134 = vrot.slane %v65, %v133
    %v135 = vlaneseq
    %v136 = vshrl.u32 %v135, 7
    %v137 = vsub.s32 1, %v136
    %v138 = vrot.slane %v65, %v137
    %v141 = vsub.f32 %v66, %v134
    %v142 = vsub.f32 %v67, %v138
    %v143 = vsub.f32 %v68, %v134
    %v144 = vsub.f32 %v69, %v138
    %v145 = vsub.f32 %v70, %v134
    %v146 = vsub.f32 %v71, %v138
    %v147 = vsub.f32 %v72, %v134
    %v148 = vsub.f32 %v73, %v138
    %v149 = vsub.f32 %v74, %v134
    %v150 = vsub.f32 %v75, %v138
    %v151 = vsub.f32 %v76, %v134
    %v152 = vsub.f32 %v77, %v138
    %v153 = vsub.f32 %v78, %v134
    %v154 = vsub.f32 %v79, %v138
    %v155 = vsub.f32 %v80, %v134
    %v156 = vsub.f32 %v81, %v138
    %v157 = vsub.f32 %v82, %v134
    %v158 = vsub.f32 %v83, %v138
    %v159 = vsub.f32 %v84, %v134
    %v160 = vsub.f32 %v85, %v138
    %v161 = vsub.f32 %v86, %v134
    %v162 = vsub.f32 %v87, %v138
    %v163 = vsub.f32 %v88, %v134
    %v164 = vsub.f32 %v89, %v138
    %v165 = vsub.f32 %v90, %v134
    %v166 = vsub.f32 %v91, %v138
    %v167 = vsub.f32 %v92, %v134
    %v168 = vsub.f32 %v93, %v138
    %v169 = vsub.f32 %v94, %v134
    %v170 = vsub.f32 %v95, %v138
    %v171 = vsub.f32 %v96, %v134
    %v172 = vsub.f32 %v97, %v138
    %v173 = vsub.f32 %v98, %v134
    %v174 = vsub.f32 %v99, %v138
    %v175 = vsub.f32 %v100, %v134
    %v176 = vsub.f32 %v101, %v138
    %v177 = vsub.f32 %v102, %v134
    %v178 = vsub.f32 %v103, %v138
    %v179 = vsub.f32 %v104, %v134
    %v180 = vsub.f32 %v105, %v138
    %v181 = vsub.f32 %v106, %v134
    %v182 = vsub.f32 %v107, %v138
    %v183 = vsub.f32 %v108, %v134
    %v184 = vsub.f32 %v109, %v138
    %v185 = vsub.f32 %v110, %v134
    %v186 = vsub.f32 %v111, %v138
    %v187 = vsub.f32 %v112, %v134
    %v188 = vsub.f32 %v113, %v138
    %v189 = vsub.f32 %v114, %v134
    %v190 = vsub.f32 %v115, %v138
    %v191 = vsub.f32 %v116, %v134
    %v192 = vsub.f32 %v117, %v138
    %v193 = vsub.f32 %v118, %v134
    %v194 = vsub.f32 %v119, %v138
    %v195 = vsub.f32 %v120, %v134
    %v196 = vsub.f32 %v121, %v138
    %v197 = vsub.f32 %v122, %v134
    %v198 = vsub.f32 %v123, %v138
    %v199 = vsub.f32 %v124, %v134
    %v200 = vsub.f32 %v125, %v138
    %v201 = vsub.f32 %v126, %v134
    %v202 = vsub.f32 %v127, %v138
    %v203 = vsub.f32 %v128, %v134
    %v204 = vsub.f32 %v129, %v138
    %v205 = vpack.c.bf16 %v143, %v141
    %v206 = vpack.c.bf16 %v144, %v142
    %v207 = vpack.c.bf16 %v147, %v145
    %v208 = vpack.c.bf16 %v148, %v146
    %v209 = vpack.c.bf16 %v151, %v149
    %v210 = vpack.c.bf16 %v152, %v150
    %v211 = vpack.c.bf16 %v155, %v153
    %v212 = vpack.c.bf16 %v156, %v154
    %v213 = vpack.c.bf16 %v159, %v157
    %v214 = vpack.c.bf16 %v160, %v158
    %v215 = vpack.c.bf16 %v163, %v161
    %v216 = vpack.c.bf16 %v164, %v162
    %v217 = vpack.c.bf16 %v167, %v165
    %v218 = vpack.c.bf16 %v168, %v166
    %v219 = vpack.c.bf16 %v171, %v169
    %v220 = vpack.c.bf16 %v172, %v170
    %v221 = vpack.c.bf16 %v175, %v173
    %v222 = vpack.c.bf16 %v176, %v174
    %v223 = vpack.c.bf16 %v179, %v177
    %v224 = vpack.c.bf16 %v180, %v178
    %v225 = vpack.c.bf16 %v183, %v181
    %v226 = vpack.c.bf16 %v184, %v182
    %v227 = vpack.c.bf16 %v187, %v185
    %v228 = vpack.c.bf16 %v188, %v186
    %v229 = vpack.c.bf16 %v191, %v189
    %v230 = vpack.c.bf16 %v192, %v190
    %v231 = vpack.c.bf16 %v195, %v193
    %v232 = vpack.c.bf16 %v196, %v194
    %v233 = vpack.c.bf16 %v199, %v197
    %v234 = vpack.c.bf16 %v200, %v198
    %v235 = vpack.c.bf16 %v203, %v201
    %v236 = vpack.c.bf16 %v204, %v202
    %v237 = vld [vmem:[#allocation5] sm:$0xff]
    %v238 = vld [vmem:[#allocation5 + $0x8] sm:$0xff]
    %v239 = vld [vmem:[#allocation5 + $0x10] sm:$0xff]
    %v240 = vld [vmem:[#allocation5 + $0x18] sm:$0xff]
    %v241 = vld [vmem:[#allocation5 + $0x20] sm:$0xff]
    %v242 = vld [vmem:[#allocation5 + $0x28] sm:$0xff]
    %v243 = vld [vmem:[#allocation5 + $0x30] sm:$0xff]
    %v244 = vld [vmem:[#allocation5 + $0x38] sm:$0xff]
    %v245 = vld [vmem:[#allocation5 + $0x40] sm:$0xff]
    %v246 = vld [vmem:[#allocation5 + $0x48] sm:$0xff]
    %v247 = vld [vmem:[#allocation5 + $0x50] sm:$0xff]
    %v248 = vld [vmem:[#allocation5 + $0x58] sm:$0xff]
    %v249 = vld [vmem:[#allocation5 + $0x60] sm:$0xff]
    %v250 = vld [vmem:[#allocation5 + $0x68] sm:$0xff]
    %v251 = vld [vmem:[#allocation5 + $0x70] sm:$0xff]
    %v252 = vld [vmem:[#allocation5 + $0x78] sm:$0xff]
    %v253 = vld [vmem:[#allocation5 + $0x80] sm:$0xff]
    %v254 = vld [vmem:[#allocation5 + $0x88] sm:$0xff]
    %v255 = vld [vmem:[#allocation5 + $0x90] sm:$0xff]
    %v256 = vld [vmem:[#allocation5 + $0x98] sm:$0xff]
    %v257 = vld [vmem:[#allocation5 + $0xa0] sm:$0xff]
    %v258 = vld [vmem:[#allocation5 + $0xa8] sm:$0xff]
    %v259 = vld [vmem:[#allocation5 + $0xb0] sm:$0xff]
    %v260 = vld [vmem:[#allocation5 + $0xb8] sm:$0xff]
    %v261 = vld [vmem:[#allocation5 + $0xc0] sm:$0xff]
    %v262 = vld [vmem:[#allocation5 + $0xc8] sm:$0xff]
    %v263 = vld [vmem:[#allocation5 + $0xd0] sm:$0xff]
    %v264 = vld [vmem:[#allocation5 + $0xd8] sm:$0xff]
    %v265 = vld [vmem:[#allocation5 + $0xe0] sm:$0xff]
    %v266 = vld [vmem:[#allocation5 + $0xe8] sm:$0xff]
    %v267 = vld [vmem:[#allocation5 + $0xf0] sm:$0xff]
    %v268 = vld [vmem:[#allocation5 + $0xf8] sm:$0xff]
    %v269 = vld [vmem:[#allocation5 + $0x100] sm:$0xff]
    %v270 = vld [vmem:[#allocation5 + $0x108] sm:$0xff]
    %v271 = vld [vmem:[#allocation5 + $0x110] sm:$0xff]
    %v272 = vld [vmem:[#allocation5 + $0x118] sm:$0xff]
    %v273 = vld [vmem:[#allocation5 + $0x120] sm:$0xff]
    %v274 = vld [vmem:[#allocation5 + $0x128] sm:$0xff]
    %v275 = vld [vmem:[#allocation5 + $0x130] sm:$0xff]
    %v276 = vld [vmem:[#allocation5 + $0x138] sm:$0xff]
    %v277 = vld [vmem:[#allocation5 + $0x140] sm:$0xff]
    %v278 = vld [vmem:[#allocation5 + $0x148] sm:$0xff]
    %v279 = vld [vmem:[#allocation5 + $0x150] sm:$0xff]
    %v280 = vld [vmem:[#allocation5 + $0x158] sm:$0xff]
    %v281 = vld [vmem:[#allocation5 + $0x160] sm:$0xff]
    %v282 = vld [vmem:[#allocation5 + $0x168] sm:$0xff]
    %v283 = vld [vmem:[#allocation5 + $0x170] sm:$0xff]
    %v284 = vld [vmem:[#allocation5 + $0x178] sm:$0xff]
    %v285 = vld [vmem:[#allocation5 + $0x180] sm:$0xff]
    %v286 = vld [vmem:[#allocation5 + $0x188] sm:$0xff]
    %v287 = vld [vmem:[#allocation5 + $0x190] sm:$0xff]
    %v288 = vld [vmem:[#allocation5 + $0x198] sm:$0xff]
    %v289 = vld [vmem:[#allocation5 + $0x1a0] sm:$0xff]
    %v290 = vld [vmem:[#allocation5 + $0x1a8] sm:$0xff]
    %v291 = vld [vmem:[#allocation5 + $0x1b0] sm:$0xff]
    %v292 = vld [vmem:[#allocation5 + $0x1b8] sm:$0xff]
    %v293 = vld [vmem:[#allocation5 + $0x1c0] sm:$0xff]
    %v294 = vld [vmem:[#allocation5 + $0x1c8] sm:$0xff]
    %v295 = vld [vmem:[#allocation5 + $0x1d0] sm:$0xff]
    %v296 = vld [vmem:[#allocation5 + $0x1d8] sm:$0xff]
    %v297 = vld [vmem:[#allocation5 + $0x1e0] sm:$0xff]
    %v298 = vld [vmem:[#allocation5 + $0x1e8] sm:$0xff]
    %v299 = vld [vmem:[#allocation5 + $0x1f0] sm:$0xff]
    %v300 = vld [vmem:[#allocation5 + $0x1f8] sm:$0xff]
    %v301 = vld [vmem:[%s3] sm:$0xf]
    %v303 = vlaneseq
    %v304 = vshrl.u32 %v303, 7
    %v305 = vsub.s32 0, %v304
    %v306 = vrot.slane %v301, %v305
    %v307 = vlaneseq
    %v308 = vshrl.u32 %v307, 7
    %v309 = vsub.s32 1, %v308
    %v310 = vrot.slane %v301, %v309
    %v311 = vlaneseq
    %v312 = vshrl.u32 %v311, 7
    %v313 = vsub.s32 2, %v312
    %v314 = vrot.slane %v301, %v313
    %v315 = vlaneseq
    %v316 = vshrl.u32 %v315, 7
    %v317 = vsub.s32 3, %v316
    %v318 = vrot.slane %v301, %v317
    %v387 = vunpack.c.l.b16 %v237
    %v388 = vunpack.c.h.b16 %v237
    %v389 = vunpack.c.l.b16 %v238
    %v390 = vunpack.c.h.b16 %v238
    %v391 = vunpack.c.l.b16 %v239
    %v392 = vunpack.c.h.b16 %v239
    %v393 = vunpack.c.l.b16 %v240
    %v394 = vunpack.c.h.b16 %v240
    %v395 = vunpack.c.l.b16 %v241
    %v396 = vunpack.c.h.b16 %v241
    %v397 = vunpack.c.l.b16 %v242
    %v398 = vunpack.c.h.b16 %v242
    %v399 = vunpack.c.l.b16 %v243
    %v400 = vunpack.c.h.b16 %v243
    %v401 = vunpack.c.l.b16 %v244
    %v402 = vunpack.c.h.b16 %v244
    %v403 = vunpack.c.l.b16 %v245
    %v404 = vunpack.c.h.b16 %v245
    %v405 = vunpack.c.l.b16 %v246
    %v406 = vunpack.c.h.b16 %v246
    %v407 = vunpack.c.l.b16 %v247
    %v408 = vunpack.c.h.b16 %v247
    %v409 = vunpack.c.l.b16 %v248
    %v410 = vunpack.c.h.b16 %v248
    %v411 = vunpack.c.l.b16 %v249
    %v412 = vunpack.c.h.b16 %v249
    %v413 = vunpack.c.l.b16 %v250
    %v414 = vunpack.c.h.b16 %v250
    %v415 = vunpack.c.l.b16 %v251
    %v416 = vunpack.c.h.b16 %v251
    %v417 = vunpack.c.l.b16 %v252
    %v418 = vunpack.c.h.b16 %v252
    %v419 = vunpack.c.l.b16 %v253
    %v420 = vunpack.c.h.b16 %v253
    %v421 = vunpack.c.l.b16 %v254
    %v422 = vunpack.c.h.b16 %v254
    %v423 = vunpack.c.l.b16 %v255
    %v424 = vunpack.c.h.b16 %v255
    %v425 = vunpack.c.l.b16 %v256
    %v426 = vunpack.c.h.b16 %v256
    %v427 = vunpack.c.l.b16 %v257
    %v428 = vunpack.c.h.b16 %v257
    %v429 = vunpack.c.l.b16 %v258
    %v430 = vunpack.c.h.b16 %v258
    %v431 = vunpack.c.l.b16 %v259
    %v432 = vunpack.c.h.b16 %v259
    %v433 = vunpack.c.l.b16 %v260
    %v434 = vunpack.c.h.b16 %v260
    %v435 = vunpack.c.l.b16 %v261
    %v436 = vunpack.c.h.b16 %v261
    %v437 = vunpack.c.l.b16 %v262
    %v438 = vunpack.c.h.b16 %v262
    %v439 = vunpack.c.l.b16 %v263
    %v440 = vunpack.c.h.b16 %v263
    %v441 = vunpack.c.l.b16 %v264
    %v442 = vunpack.c.h.b16 %v264
    %v443 = vunpack.c.l.b16 %v265
    %v444 = vunpack.c.h.b16 %v265
    %v445 = vunpack.c.l.b16 %v266
    %v446 = vunpack.c.h.b16 %v266
    %v447 = vunpack.c.l.b16 %v267
    %v448 = vunpack.c.h.b16 %v267
    %v449 = vunpack.c.l.b16 %v268
    %v450 = vunpack.c.h.b16 %v268
    %v451 = vunpack.c.l.b16 %v269
    %v452 = vunpack.c.h.b16 %v269
    %v453 = vunpack.c.l.b16 %v270
    %v454 = vunpack.c.h.b16 %v270
    %v455 = vunpack.c.l.b16 %v271
    %v456 = vunpack.c.h.b16 %v271
    %v457 = vunpack.c.l.b16 %v272
    %v458 = vunpack.c.h.b16 %v272
    %v459 = vunpack.c.l.b16 %v273
    %v460 = vunpack.c.h.b16 %v273
    %v461 = vunpack.c.l.b16 %v274
    %v462 = vunpack.c.h.b16 %v274
    %v463 = vunpack.c.l.b16 %v275
    %v464 = vunpack.c.h.b16 %v275
    %v465 = vunpack.c.l.b16 %v276
    %v466 = vunpack.c.h.b16 %v276
    %v467 = vunpack.c.l.b16 %v277
    %v468 = vunpack.c.h.b16 %v277
    %v469 = vunpack.c.l.b16 %v278
    %v470 = vunpack.c.h.b16 %v278
    %v471 = vunpack.c.l.b16 %v279
    %v472 = vunpack.c.h.b16 %v279
    %v473 = vunpack.c.l.b16 %v280
    %v474 = vunpack.c.h.b16 %v280
    %v475 = vunpack.c.l.b16 %v281
    %v476 = vunpack.c.h.b16 %v281
    %v477 = vunpack.c.l.b16 %v282
    %v478 = vunpack.c.h.b16 %v282
    %v479 = vunpack.c.l.b16 %v283
    %v480 = vunpack.c.h.b16 %v283
    %v481 = vunpack.c.l.b16 %v284
    %v482 = vunpack.c.h.b16 %v284
    %v483 = vunpack.c.l.b16 %v285
    %v484 = vunpack.c.h.b16 %v285
    %v485 = vunpack.c.l.b16 %v286
    %v486 = vunpack.c.h.b16 %v286
    %v487 = vunpack.c.l.b16 %v287
    %v488 = vunpack.c.h.b16 %v287
    %v489 = vunpack.c.l.b16 %v288
    %v490 = vunpack.c.h.b16 %v288
    %v491 = vunpack.c.l.b16 %v289
    %v492 = vunpack.c.h.b16 %v289
    %v493 = vunpack.c.l.b16 %v290
    %v494 = vunpack.c.h.b16 %v290
    %v495 = vunpack.c.l.b16 %v291
    %v496 = vunpack.c.h.b16 %v291
    %v497 = vunpack.c.l.b16 %v292
    %v498 = vunpack.c.h.b16 %v292
    %v499 = vunpack.c.l.b16 %v293
    %v500 = vunpack.c.h.b16 %v293
    %v501 = vunpack.c.l.b16 %v294
    %v502 = vunpack.c.h.b16 %v294
    %v503 = vunpack.c.l.b16 %v295
    %v504 = vunpack.c.h.b16 %v295
    %v505 = vunpack.c.l.b16 %v296
    %v506 = vunpack.c.h.b16 %v296
    %v507 = vunpack.c.l.b16 %v297
    %v508 = vunpack.c.h.b16 %v297
    %v509 = vunpack.c.l.b16 %v298
    %v510 = vunpack.c.h.b16 %v298
    %v511 = vunpack.c.l.b16 %v299
    %v512 = vunpack.c.h.b16 %v299
    %v513 = vunpack.c.l.b16 %v300
    %v514 = vunpack.c.h.b16 %v300
    %v515 = vpack.c.b16 %v391, %v387
    %v516 = vpack.c.b16 %v392, %v388
    %v517 = vpack.c.b16 %v393, %v389
    %v518 = vpack.c.b16 %v394, %v390
    %v519 = vpack.c.b16 %v399, %v395
    %v520 = vpack.c.b16 %v400, %v396
    %v521 = vpack.c.b16 %v401, %v397
    %v522 = vpack.c.b16 %v402, %v398
    %v523 = vpack.c.b16 %v407, %v403
    %v524 = vpack.c.b16 %v408, %v404
    %v525 = vpack.c.b16 %v409, %v405
    %v526 = vpack.c.b16 %v410, %v406
    %v527 = vpack.c.b16 %v415, %v411
    %v528 = vpack.c.b16 %v416, %v412
    %v529 = vpack.c.b16 %v417, %v413
    %v530 = vpack.c.b16 %v418, %v414
    %v531 = vpack.c.b16 %v423, %v419
    %v532 = vpack.c.b16 %v424, %v420
    %v533 = vpack.c.b16 %v425, %v421
    %v534 = vpack.c.b16 %v426, %v422
    %v535 = vpack.c.b16 %v431, %v427
    %v536 = vpack.c.b16 %v432, %v428
    %v537 = vpack.c.b16 %v433, %v429
    %v538 = vpack.c.b16 %v434, %v430
    %v539 = vpack.c.b16 %v439, %v435
    %v540 = vpack.c.b16 %v440, %v436
    %v541 = vpack.c.b16 %v441, %v437
    %v542 = vpack.c.b16 %v442, %v438
    %v543 = vpack.c.b16 %v447, %v443
    %v544 = vpack.c.b16 %v448, %v444
    %v545 = vpack.c.b16 %v449, %v445
    %v546 = vpack.c.b16 %v450, %v446
    %v547 = vpack.c.b16 %v455, %v451
    %v548 = vpack.c.b16 %v456, %v452
    %v549 = vpack.c.b16 %v457, %v453
    %v550 = vpack.c.b16 %v458, %v454
    %v551 = vpack.c.b16 %v463, %v459
    %v552 = vpack.c.b16 %v464, %v460
    %v553 = vpack.c.b16 %v465, %v461
    %v554 = vpack.c.b16 %v466, %v462
    %v555 = vpack.c.b16 %v471, %v467
    %v556 = vpack.c.b16 %v472, %v468
    %v557 = vpack.c.b16 %v473, %v469
    %v558 = vpack.c.b16 %v474, %v470
    %v559 = vpack.c.b16 %v479, %v475
    %v560 = vpack.c.b16 %v480, %v476
    %v561 = vpack.c.b16 %v481, %v477
    %v562 = vpack.c.b16 %v482, %v478
    %v563 = vpack.c.b16 %v487, %v483
    %v564 = vpack.c.b16 %v488, %v484
    %v565 = vpack.c.b16 %v489, %v485
    %v566 = vpack.c.b16 %v490, %v486
    %v567 = vpack.c.b16 %v495, %v491
    %v568 = vpack.c.b16 %v496, %v492
    %v569 = vpack.c.b16 %v497, %v493
    %v570 = vpack.c.b16 %v498, %v494
    %v571 = vpack.c.b16 %v503, %v499
    %v572 = vpack.c.b16 %v504, %v500
    %v573 = vpack.c.b16 %v505, %v501
    %v574 = vpack.c.b16 %v506, %v502
    %v575 = vpack.c.b16 %v511, %v507
    %v576 = vpack.c.b16 %v512, %v508
    %v577 = vpack.c.b16 %v513, %v509
    %v578 = vpack.c.b16 %v514, %v510
    %643 = vmatprep.subr.bf16.mxu0 %v516
    %644 = vmatpush1.bf16.msra.mxu0 %v515
    %645 = vmatprep.subr.bf16.mxu0 %v520
    %646 = vmatpush1.bf16.msra.mxu0 %v519
    %647 = vmatprep.subr.bf16.mxu0 %v524
    %648 = vmatpush1.bf16.msra.mxu0 %v523
    %649 = vmatprep.subr.bf16.mxu0 %v528
    %650 = vmatpush1.bf16.msra.mxu0 %v527
    %651 = vmatprep.subr.bf16.mxu0 %v532
    %652 = vmatpush1.bf16.msra.mxu0 %v531
    %653 = vmatprep.subr.bf16.mxu0 %v536
    %654 = vmatpush1.bf16.msra.mxu0 %v535
    %655 = vmatprep.subr.bf16.mxu0 %v540
    %656 = vmatpush1.bf16.msra.mxu0 %v539
    %657 = vmatprep.subr.bf16.mxu0 %v544
    %658 = vmatpush1.bf16.msra.mxu0 %v543
    %659 = vmatprep.subr.bf16.mxu0 %v548
    %660 = vmatpush1.bf16.msra.mxu0 %v547
    %661 = vmatprep.subr.bf16.mxu0 %v552
    %662 = vmatpush1.bf16.msra.mxu0 %v551
    %663 = vmatprep.subr.bf16.mxu0 %v556
    %664 = vmatpush1.bf16.msra.mxu0 %v555
    %665 = vmatprep.subr.bf16.mxu0 %v560
    %666 = vmatpush1.bf16.msra.mxu0 %v559
    %667 = vmatprep.subr.bf16.mxu0 %v564
    %668 = vmatpush1.bf16.msra.mxu0 %v563
    %669 = vmatprep.subr.bf16.mxu0 %v568
    %670 = vmatpush1.bf16.msra.mxu0 %v567
    %671 = vmatprep.subr.bf16.mxu0 %v572
    %672 = vmatpush1.bf16.msra.mxu0 %v571
    %673 = vmatprep.subr.bf16.mxu0 %v576
    %674 = vmatpush1.bf16.msra.mxu0 %v575
    %675 = vmatprep.mubr.bf16.mxu0 %v206
    %676 = vmatmul.mubr.bf16.gmra.mrb[0].mxu0 %v205
    %v677 = vpop.f32.mrb[0].mxu0
    %v678 = vadd.f32 %v306, %v677
    %v679 = vpop.f32.mrb[0].mxu0
    %v680 = vadd.f32 %v310, %v679
    %v681 = vpop.f32.mrb[0].mxu0
    %v682 = vadd.f32 %v306, %v681
    %v683 = vpop.f32.mrb[0].mxu0
    %v684 = vadd.f32 %v310, %v683
    %685 = vmatprep.mubr.bf16.mxu0 %v208
    %686 = vmatmul.mubr.bf16.gmra.mrb[0].mxu0 %v207
    %v687 = vpop.f32.mrb[0].mxu0
    %v688 = vadd.f32 %v306, %v687
    %v689 = vpop.f32.mrb[0].mxu0
    %v690 = vadd.f32 %v310, %v689
    %v691 = vpop.f32.mrb[0].mxu0
    %v692 = vadd.f32 %v306, %v691
    %v693 = vpop.f32.mrb[0].mxu0
    %v694 = vadd.f32 %v310, %v693
    %695 = vmatprep.mubr.bf16.mxu0 %v210
    %696 = vmatmul.mubr.bf16.gmra.mrb[0].mxu0 %v209
    %v697 = vpop.f32.mrb[0].mxu0
    %v698 = vadd.f32 %v306, %v697
    %v699 = vpop.f32.mrb[0].mxu0
    %v700 = vadd.f32 %v310, %v699
    %v701 = vpop.f32.mrb[0].mxu0
    %v702 = vadd.f32 %v306, %v701
    %v703 = vpop.f32.mrb[0].mxu0
    %v704 = vadd.f32 %v310, %v703
    %705 = vmatprep.mubr.bf16.mxu0 %v212
    %706 = vmatmul.mubr.bf16.gmra.mrb[0].mxu0 %v211
    %v707 = vpop.f32.mrb[0].mxu0
    %v708 = vadd.f32 %v306, %v707
    %v709 = vpop.f32.mrb[0].mxu0
    %v710 = vadd.f32 %v310, %v709
    %v711 = vpop.f32.mrb[0].mxu0
    %v712 = vadd.f32 %v306, %v711
    %v713 = vpop.f32.mrb[0].mxu0
    %v714 = vadd.f32 %v310, %v713
    %715 = vmatprep.mubr.bf16.mxu0 %v214
    %716 = vmatmul.mubr.bf16.gmra.mrb[0].mxu0 %v213
    %v717 = vpop.f32.mrb[0].mxu0
    %v718 = vadd.f32 %v306, %v717
    %v719 = vpop.f32.mrb[0].mxu0
    %v720 = vadd.f32 %v310, %v719
    %v721 = vpop.f32.mrb[0].mxu0
    %v722 = vadd.f32 %v306, %v721
    %v723 = vpop.f32.mrb[0].mxu0
    %v724 = vadd.f32 %v310, %v723
    %725 = vmatprep.mubr.bf16.mxu0 %v216
    %726 = vmatmul.mubr.bf16.gmra.mrb[0].mxu0 %v215
    %v727 = vpop.f32.mrb[0].mxu0
    %v728 = vadd.f32 %v306, %v727
    %v729 = vpop.f32.mrb[0].mxu0
    %v730 = vadd.f32 %v310, %v729
    %v731 = vpop.f32.mrb[0].mxu0
    %v732 = vadd.f32 %v306, %v731
    %v733 = vpop.f32.mrb[0].mxu0
    %v734 = vadd.f32 %v310, %v733
    %735 = vmatprep.mubr.bf16.mxu0 %v218
    %736 = vmatmul.mubr.bf16.gmra.mrb[0].mxu0 %v217
    %v737 = vpop.f32.mrb[0].mxu0
    %v738 = vadd.f32 %v306, %v737
    %v739 = vpop.f32.mrb[0].mxu0
    %v740 = vadd.f32 %v310, %v739
    %v741 = vpop.f32.mrb[0].mxu0
    %v742 = vadd.f32 %v306, %v741
    %v743 = vpop.f32.mrb[0].mxu0
    %v744 = vadd.f32 %v310, %v743
    %745 = vmatprep.mubr.bf16.mxu0 %v220
    %746 = vmatmul.mubr.bf16.gmra.mrb[0].mxu0 %v219
    %v747 = vpop.f32.mrb[0].mxu0
    %v748 = vadd.f32 %v306, %v747
    %v749 = vpop.f32.mrb[0].mxu0
    %v750 = vadd.f32 %v310, %v749
    %v751 = vpop.f32.mrb[0].mxu0
    %v752 = vadd.f32 %v306, %v751
    %v753 = vpop.f32.mrb[0].mxu0
    %v754 = vadd.f32 %v310, %v753
    %755 = vmatprep.mubr.bf16.mxu0 %v222
    %756 = vmatmul.mubr.bf16.gmra.mrb[0].mxu0 %v221
    %v757 = vpop.f32.mrb[0].mxu0
    %v758 = vadd.f32 %v306, %v757
    %v759 = vpop.f32.mrb[0].mxu0
    %v760 = vadd.f32 %v310, %v759
    %v761 = vpop.f32.mrb[0].mxu0
    %v762 = vadd.f32 %v306, %v761
    %v763 = vpop.f32.mrb[0].mxu0
    %v764 = vadd.f32 %v310, %v763
    %765 = vmatprep.mubr.bf16.mxu0 %v224
    %766 = vmatmul.mubr.bf16.gmra.mrb[0].mxu0 %v223
    %v767 = vpop.f32.mrb[0].mxu0
    %v768 = vadd.f32 %v306, %v767
    %v769 = vpop.f32.mrb[0].mxu0
    %v770 = vadd.f32 %v310, %v769
    %v771 = vpop.f32.mrb[0].mxu0
    %v772 = vadd.f32 %v306, %v771
    %v773 = vpop.f32.mrb[0].mxu0
    %v774 = vadd.f32 %v310, %v773
    %775 = vmatprep.mubr.bf16.mxu0 %v226
    %776 = vmatmul.mubr.bf16.gmra.mrb[0].mxu0 %v225
    %v777 = vpop.f32.mrb[0].mxu0
    %v778 = vadd.f32 %v306, %v777
    %v779 = vpop.f32.mrb[0].mxu0
    %v780 = vadd.f32 %v310, %v779
    %v781 = vpop.f32.mrb[0].mxu0
    %v782 = vadd.f32 %v306, %v781
    %v783 = vpop.f32.mrb[0].mxu0
    %v784 = vadd.f32 %v310, %v783
    %785 = vmatprep.mubr.bf16.mxu0 %v228
    %786 = vmatmul.mubr.bf16.gmra.mrb[0].mxu0 %v227
    %v787 = vpop.f32.mrb[0].mxu0
    %v788 = vadd.f32 %v306, %v787
    %v789 = vpop.f32.mrb[0].mxu0
    %v790 = vadd.f32 %v310, %v789
    %v791 = vpop.f32.mrb[0].mxu0
    %v792 = vadd.f32 %v306, %v791
    %v793 = vpop.f32.mrb[0].mxu0
    %v794 = vadd.f32 %v310, %v793
    %795 = vmatprep.mubr.bf16.mxu0 %v230
    %796 = vmatmul.mubr.bf16.gmra.mrb[0].mxu0 %v229
    %v797 = vpop.f32.mrb[0].mxu0
    %v798 = vadd.f32 %v306, %v797
    %v799 = vpop.f32.mrb[0].mxu0
    %v800 = vadd.f32 %v310, %v799
    %v801 = vpop.f32.mrb[0].mxu0
    %v802 = vadd.f32 %v306, %v801
    %v803 = vpop.f32.mrb[0].mxu0
    %v804 = vadd.f32 %v310, %v803
    %805 = vmatprep.mubr.bf16.mxu0 %v232
    %806 = vmatmul.mubr.bf16.gmra.mrb[0].mxu0 %v231
    %v807 = vpop.f32.mrb[0].mxu0
    %v808 = vadd.f32 %v306, %v807
    %v809 = vpop.f32.mrb[0].mxu0
    %v810 = vadd.f32 %v310, %v809
    %v811 = vpop.f32.mrb[0].mxu0
    %v812 = vadd.f32 %v306, %v811
    %v813 = vpop.f32.mrb[0].mxu0
    %v814 = vadd.f32 %v310, %v813
    %815 = vmatprep.mubr.bf16.mxu0 %v234
    %816 = vmatmul.mubr.bf16.gmra.mrb[0].mxu0 %v233
    %v817 = vpop.f32.mrb[0].mxu0
    %v818 = vadd.f32 %v306, %v817
    %v819 = vpop.f32.mrb[0].mxu0
    %v820 = vadd.f32 %v310, %v819
    %v821 = vpop.f32.mrb[0].mxu0
    %v822 = vadd.f32 %v306, %v821
    %v823 = vpop.f32.mrb[0].mxu0
    %v824 = vadd.f32 %v310, %v823
    %825 = vmatprep.mubr.bf16.mxu0 %v236
    %826 = vmatmul.mubr.bf16.gmra.mrb[0].mxu0 %v235
    %v827 = vpop.f32.mrb[0].mxu0
    %v828 = vadd.f32 %v306, %v827
    %v829 = vpop.f32.mrb[0].mxu0
    %v830 = vadd.f32 %v310, %v829
    %v831 = vpop.f32.mrb[0].mxu0
    %v832 = vadd.f32 %v306, %v831
    %v833 = vpop.f32.mrb[0].mxu0
    %v834 = vadd.f32 %v310, %v833
    %835 = vdwg.mxu0
    %836 = vmatprep.subr.bf16.mxu0 %v518
    %837 = vmatpush1.bf16.msra.mxu0 %v517
    %838 = vmatprep.subr.bf16.mxu0 %v522
    %839 = vmatpush1.bf16.msra.mxu0 %v521
    %840 = vmatprep.subr.bf16.mxu0 %v526
    %841 = vmatpush1.bf16.msra.mxu0 %v525
    %842 = vmatprep.subr.bf16.mxu0 %v530
    %843 = vmatpush1.bf16.msra.mxu0 %v529
    %844 = vmatprep.subr.bf16.mxu0 %v534
    %845 = vmatpush1.bf16.msra.mxu0 %v533
    %846 = vmatprep.subr.bf16.mxu0 %v538
    %847 = vmatpush1.bf16.msra.mxu0 %v537
    %848 = vmatprep.subr.bf16.mxu0 %v542
    %849 = vmatpush1.bf16.msra.mxu0 %v541
    %850 = vmatprep.subr.bf16.mxu0 %v546
    %851 = vmatpush1.bf16.msra.mxu0 %v545
    %852 = vmatprep.subr.bf16.mxu0 %v550
    %853 = vmatpush1.bf16.msra.mxu0 %v549
    %854 = vmatprep.subr.bf16.mxu0 %v554
    %855 = vmatpush1.bf16.msra.mxu0 %v553
    %856 = vmatprep.subr.bf16.mxu0 %v558
    %857 = vmatpush1.bf16.msra.mxu0 %v557
    %858 = vmatprep.subr.bf16.mxu0 %v562
    %859 = vmatpush1.bf16.msra.mxu0 %v561
    %860 = vmatprep.subr.bf16.mxu0 %v566
    %861 = vmatpush1.bf16.msra.mxu0 %v565
    %862 = vmatprep.subr.bf16.mxu0 %v570
    %863 = vmatpush1.bf16.msra.mxu0 %v569
    %864 = vmatprep.subr.bf16.mxu0 %v574
    %865 = vmatpush1.bf16.msra.mxu0 %v573
    %866 = vmatprep.subr.bf16.mxu0 %v578
    %867 = vmatpush1.bf16.msra.mxu0 %v577
    %868 = vmatprep.mubr.bf16.mxu0 %v206
    %869 = vmatmul.mubr.bf16.gmra.mrb[0].mxu0 %v205
    %v870 = vpop.f32.mrb[0].mxu0
    %v871 = vadd.f32 %v314, %v870
    %v872 = vpop.f32.mrb[0].mxu0
    %v873 = vadd.f32 %v318, %v872
    %v874 = vpop.f32.mrb[0].mxu0
    %v875 = vadd.f32 %v314, %v874
    %v876 = vpop.f32.mrb[0].mxu0
    %v877 = vadd.f32 %v318, %v876
    %878 = vmatprep.mubr.bf16.mxu0 %v208
    %879 = vmatmul.mubr.bf16.gmra.mrb[0].mxu0 %v207
    %v880 = vpop.f32.mrb[0].mxu0
    %v881 = vadd.f32 %v314, %v880
    %v882 = vpop.f32.mrb[0].mxu0
    %v883 = vadd.f32 %v318, %v882
    %v884 = vpop.f32.mrb[0].mxu0
    %v885 = vadd.f32 %v314, %v884
    %v886 = vpop.f32.mrb[0].mxu0
    %v887 = vadd.f32 %v318, %v886
    %888 = vmatprep.mubr.bf16.mxu0 %v210
    %889 = vmatmul.mubr.bf16.gmra.mrb[0].mxu0 %v209
    %v890 = vpop.f32.mrb[0].mxu0
    %v891 = vadd.f32 %v314, %v890
    %v892 = vpop.f32.mrb[0].mxu0
    %v893 = vadd.f32 %v318, %v892
    %v894 = vpop.f32.mrb[0].mxu0
    %v895 = vadd.f32 %v314, %v894
    %v896 = vpop.f32.mrb[0].mxu0
    %v897 = vadd.f32 %v318, %v896
    %898 = vmatprep.mubr.bf16.mxu0 %v212
    %899 = vmatmul.mubr.bf16.gmra.mrb[0].mxu0 %v211
    %v900 = vpop.f32.mrb[0].mxu0
    %v901 = vadd.f32 %v314, %v900
    %v902 = vpop.f32.mrb[0].mxu0
    %v903 = vadd.f32 %v318, %v902
    %v904 = vpop.f32.mrb[0].mxu0
    %v905 = vadd.f32 %v314, %v904
    %v906 = vpop.f32.mrb[0].mxu0
    %v907 = vadd.f32 %v318, %v906
    %908 = vmatprep.mubr.bf16.mxu0 %v214
    %909 = vmatmul.mubr.bf16.gmra.mrb[0].mxu0 %v213
    %v910 = vpop.f32.mrb[0].mxu0
    %v911 = vadd.f32 %v314, %v910
    %v912 = vpop.f32.mrb[0].mxu0
    %v913 = vadd.f32 %v318, %v912
    %v914 = vpop.f32.mrb[0].mxu0
    %v915 = vadd.f32 %v314, %v914
    %v916 = vpop.f32.mrb[0].mxu0
    %v917 = vadd.f32 %v318, %v916
    %918 = vmatprep.mubr.bf16.mxu0 %v216
    %919 = vmatmul.mubr.bf16.gmra.mrb[0].mxu0 %v215
    %v920 = vpop.f32.mrb[0].mxu0
    %v921 = vadd.f32 %v314, %v920
    %v922 = vpop.f32.mrb[0].mxu0
    %v923 = vadd.f32 %v318, %v922
    %v924 = vpop.f32.mrb[0].mxu0
    %v925 = vadd.f32 %v314, %v924
    %v926 = vpop.f32.mrb[0].mxu0
    %v927 = vadd.f32 %v318, %v926
    %928 = vmatprep.mubr.bf16.mxu0 %v218
    %929 = vmatmul.mubr.bf16.gmra.mrb[0].mxu0 %v217
    %v930 = vpop.f32.mrb[0].mxu0
    %v931 = vadd.f32 %v314, %v930
    %v932 = vpop.f32.mrb[0].mxu0
    %v933 = vadd.f32 %v318, %v932
    %v934 = vpop.f32.mrb[0].mxu0
    %v935 = vadd.f32 %v314, %v934
    %v936 = vpop.f32.mrb[0].mxu0
    %v937 = vadd.f32 %v318, %v936
    %938 = vmatprep.mubr.bf16.mxu0 %v220
    %939 = vmatmul.mubr.bf16.gmra.mrb[0].mxu0 %v219
    %v940 = vpop.f32.mrb[0].mxu0
    %v941 = vadd.f32 %v314, %v940
    %v942 = vpop.f32.mrb[0].mxu0
    %v943 = vadd.f32 %v318, %v942
    %v944 = vpop.f32.mrb[0].mxu0
    %v945 = vadd.f32 %v314, %v944
    %v946 = vpop.f32.mrb[0].mxu0
    %v947 = vadd.f32 %v318, %v946
    %948 = vmatprep.mubr.bf16.mxu0 %v222
    %949 = vmatmul.mubr.bf16.gmra.mrb[0].mxu0 %v221
    %v950 = vpop.f32.mrb[0].mxu0
    %v951 = vadd.f32 %v314, %v950
    %v952 = vpop.f32.mrb[0].mxu0
    %v953 = vadd.f32 %v318, %v952
    %v954 = vpop.f32.mrb[0].mxu0
    %v955 = vadd.f32 %v314, %v954
    %v956 = vpop.f32.mrb[0].mxu0
    %v957 = vadd.f32 %v318, %v956
    %958 = vmatprep.mubr.bf16.mxu0 %v224
    %959 = vmatmul.mubr.bf16.gmra.mrb[0].mxu0 %v223
    %v960 = vpop.f32.mrb[0].mxu0
    %v961 = vadd.f32 %v314, %v960
    %v962 = vpop.f32.mrb[0].mxu0
    %v963 = vadd.f32 %v318, %v962
    %v964 = vpop.f32.mrb[0].mxu0
    %v965 = vadd.f32 %v314, %v964
    %v966 = vpop.f32.mrb[0].mxu0
    %v967 = vadd.f32 %v318, %v966
    %968 = vmatprep.mubr.bf16.mxu0 %v226
    %969 = vmatmul.mubr.bf16.gmra.mrb[0].mxu0 %v225
    %v970 = vpop.f32.mrb[0].mxu0
    %v971 = vadd.f32 %v314, %v970
    %v972 = vpop.f32.mrb[0].mxu0
    %v973 = vadd.f32 %v318, %v972
    %v974 = vpop.f32.mrb[0].mxu0
    %v975 = vadd.f32 %v314, %v974
    %v976 = vpop.f32.mrb[0].mxu0
    %v977 = vadd.f32 %v318, %v976
    %978 = vmatprep.mubr.bf16.mxu0 %v228
    %979 = vmatmul.mubr.bf16.gmra.mrb[0].mxu0 %v227
    %v980 = vpop.f32.mrb[0].mxu0
    %v981 = vadd.f32 %v314, %v980
    %v982 = vpop.f32.mrb[0].mxu0
    %v983 = vadd.f32 %v318, %v982
    %v984 = vpop.f32.mrb[0].mxu0
    %v985 = vadd.f32 %v314, %v984
    %v986 = vpop.f32.mrb[0].mxu0
    %v987 = vadd.f32 %v318, %v986
    %988 = vmatprep.mubr.bf16.mxu0 %v230
    %989 = vmatmul.mubr.bf16.gmra.mrb[0].mxu0 %v229
    %v990 = vpop.f32.mrb[0].mxu0
    %v991 = vadd.f32 %v314, %v990
    %v992 = vpop.f32.mrb[0].mxu0
    %v993 = vadd.f32 %v318, %v992
    %v994 = vpop.f32.mrb[0].mxu0
    %v995 = vadd.f32 %v314, %v994
    %v996 = vpop.f32.mrb[0].mxu0
    %v997 = vadd.f32 %v318, %v996
    %998 = vmatprep.mubr.bf16.mxu0 %v232
    %999 = vmatmul.mubr.bf16.gmra.mrb[0].mxu0 %v231
    %v1000 = vpop.f32.mrb[0].mxu0
    %v1001 = vadd.f32 %v314, %v1000
    %v1002 = vpop.f32.mrb[0].mxu0
    %v1003 = vadd.f32 %v318, %v1002
    %v1004 = vpop.f32.mrb[0].mxu0
    %v1005 = vadd.f32 %v314, %v1004
    %v1006 = vpop.f32.mrb[0].mxu0
    %v1007 = vadd.f32 %v318, %v1006
    %1008 = vmatprep.mubr.bf16.mxu0 %v234
    %1009 = vmatmul.mubr.bf16.gmra.mrb[0].mxu0 %v233
    %v1010 = vpop.f32.mrb[0].mxu0
    %v1011 = vadd.f32 %v314, %v1010
    %v1012 = vpop.f32.mrb[0].mxu0
    %v1013 = vadd.f32 %v318, %v1012
    %v1014 = vpop.f32.mrb[0].mxu0
    %v1015 = vadd.f32 %v314, %v1014
    %v1016 = vpop.f32.mrb[0].mxu0
    %v1017 = vadd.f32 %v318, %v1016
    %1018 = vmatprep.mubr.bf16.mxu0 %v236
    %1019 = vmatmul.mubr.bf16.gmra.mrb[0].mxu0 %v235
    %v1020 = vpop.f32.mrb[0].mxu0
    %v1021 = vadd.f32 %v314, %v1020
    %v1022 = vpop.f32.mrb[0].mxu0
    %v1023 = vadd.f32 %v318, %v1022
    %v1024 = vpop.f32.mrb[0].mxu0
    %v1025 = vadd.f32 %v314, %v1024
    %v1026 = vpop.f32.mrb[0].mxu0
    %v1027 = vadd.f32 %v318, %v1026
    %1028 = vdwg.mxu0
    %v1029 = vmax.f32 %v678, 0.0
    %v1030 = vmax.f32 %v680, 0.0
    %v1031 = vmax.f32 %v871, 0.0
    %v1032 = vmax.f32 %v873, 0.0
    %v1033 = vmax.f32 %v682, 0.0
    %v1034 = vmax.f32 %v684, 0.0
    %v1035 = vmax.f32 %v875, 0.0
    %v1036 = vmax.f32 %v877, 0.0
    %v1037 = vmax.f32 %v688, 0.0
    %v1038 = vmax.f32 %v690, 0.0
    %v1039 = vmax.f32 %v881, 0.0
    %v1040 = vmax.f32 %v883, 0.0
    %v1041 = vmax.f32 %v692, 0.0
    %v1042 = vmax.f32 %v694, 0.0
    %v1043 = vmax.f32 %v885, 0.0
    %v1044 = vmax.f32 %v887, 0.0
    %v1045 = vmax.f32 %v698, 0.0
    %v1046 = vmax.f32 %v700, 0.0
    %v1047 = vmax.f32 %v891, 0.0
    %v1048 = vmax.f32 %v893, 0.0
    %v1049 = vmax.f32 %v702, 0.0
    %v1050 = vmax.f32 %v704, 0.0
    %v1051 = vmax.f32 %v895, 0.0
    %v1052 = vmax.f32 %v897, 0.0
    %v1053 = vmax.f32 %v708, 0.0
    %v1054 = vmax.f32 %v710, 0.0
    %v1055 = vmax.f32 %v901, 0.0
    %v1056 = vmax.f32 %v903, 0.0
    %v1057 = vmax.f32 %v712, 0.0
    %v1058 = vmax.f32 %v714, 0.0
    %v1059 = vmax.f32 %v905, 0.0
    %v1060 = vmax.f32 %v907, 0.0
    %v1061 = vmax.f32 %v718, 0.0
    %v1062 = vmax.f32 %v720, 0.0
    %v1063 = vmax.f32 %v911, 0.0
    %v1064 = vmax.f32 %v913, 0.0
    %v1065 = vmax.f32 %v722, 0.0
    %v1066 = vmax.f32 %v724, 0.0
    %v1067 = vmax.f32 %v915, 0.0
    %v1068 = vmax.f32 %v917, 0.0
    %v1069 = vmax.f32 %v728, 0.0
    %v1070 = vmax.f32 %v730, 0.0
    %v1071 = vmax.f32 %v921, 0.0
    %v1072 = vmax.f32 %v923, 0.0
    %v1073 = vmax.f32 %v732, 0.0
    %v1074 = vmax.f32 %v734, 0.0
    %v1075 = vmax.f32 %v925, 0.0
    %v1076 = vmax.f32 %v927, 0.0
    %v1077 = vmax.f32 %v738, 0.0
    %v1078 = vmax.f32 %v740, 0.0
    %v1079 = vmax.f32 %v931, 0.0
    %v1080 = vmax.f32 %v933, 0.0
    %v1081 = vmax.f32 %v742, 0.0
    %v1082 = vmax.f32 %v744, 0.0
    %v1083 = vmax.f32 %v935, 0.0
    %v1084 = vmax.f32 %v937, 0.0
    %v1085 = vmax.f32 %v748, 0.0
    %v1086 = vmax.f32 %v750, 0.0
    %v1087 = vmax.f32 %v941, 0.0
    %v1088 = vmax.f32 %v943, 0.0
    %v1089 = vmax.f32 %v752, 0.0
    %v1090 = vmax.f32 %v754, 0.0
    %v1091 = vmax.f32 %v945, 0.0
    %v1092 = vmax.f32 %v947, 0.0
    %v1093 = vmax.f32 %v758, 0.0
    %v1094 = vmax.f32 %v760, 0.0
    %v1095 = vmax.f32 %v951, 0.0
    %v1096 = vmax.f32 %v953, 0.0
    %v1097 = vmax.f32 %v762, 0.0
    %v1098 = vmax.f32 %v764, 0.0
    %v1099 = vmax.f32 %v955, 0.0
    %v1100 = vmax.f32 %v957, 0.0
    %v1101 = vmax.f32 %v768, 0.0
    %v1102 = vmax.f32 %v770, 0.0
    %v1103 = vmax.f32 %v961, 0.0
    %v1104 = vmax.f32 %v963, 0.0
    %v1105 = vmax.f32 %v772, 0.0
    %v1106 = vmax.f32 %v774, 0.0
    %v1107 = vmax.f32 %v965, 0.0
    %v1108 = vmax.f32 %v967, 0.0
    %v1109 = vmax.f32 %v778, 0.0
    %v1110 = vmax.f32 %v780, 0.0
    %v1111 = vmax.f32 %v971, 0.0
    %v1112 = vmax.f32 %v973, 0.0
    %v1113 = vmax.f32 %v782, 0.0
    %v1114 = vmax.f32 %v784, 0.0
    %v1115 = vmax.f32 %v975, 0.0
    %v1116 = vmax.f32 %v977, 0.0
    %v1117 = vmax.f32 %v788, 0.0
    %v1118 = vmax.f32 %v790, 0.0
    %v1119 = vmax.f32 %v981, 0.0
    %v1120 = vmax.f32 %v983, 0.0
    %v1121 = vmax.f32 %v792, 0.0
    %v1122 = vmax.f32 %v794, 0.0
    %v1123 = vmax.f32 %v985, 0.0
    %v1124 = vmax.f32 %v987, 0.0
    %v1125 = vmax.f32 %v798, 0.0
    %v1126 = vmax.f32 %v800, 0.0
    %v1127 = vmax.f32 %v991, 0.0
    %v1128 = vmax.f32 %v993, 0.0
    %v1129 = vmax.f32 %v802, 0.0
    %v1130 = vmax.f32 %v804, 0.0
    %v1131 = vmax.f32 %v995, 0.0
    %v1132 = vmax.f32 %v997, 0.0
    %v1133 = vmax.f32 %v808, 0.0
    %v1134 = vmax.f32 %v810, 0.0
    %v1135 = vmax.f32 %v1001, 0.0
    %v1136 = vmax.f32 %v1003, 0.0
    %v1137 = vmax.f32 %v812, 0.0
    %v1138 = vmax.f32 %v814, 0.0
    %v1139 = vmax.f32 %v1005, 0.0
    %v1140 = vmax.f32 %v1007, 0.0
    %v1141 = vmax.f32 %v818, 0.0
    %v1142 = vmax.f32 %v820, 0.0
    %v1143 = vmax.f32 %v1011, 0.0
    %v1144 = vmax.f32 %v1013, 0.0
    %v1145 = vmax.f32 %v822, 0.0
    %v1146 = vmax.f32 %v824, 0.0
    %v1147 = vmax.f32 %v1015, 0.0
    %v1148 = vmax.f32 %v1017, 0.0
    %v1149 = vmax.f32 %v828, 0.0
    %v1150 = vmax.f32 %v830, 0.0
    %v1151 = vmax.f32 %v1021, 0.0
    %v1152 = vmax.f32 %v1023, 0.0
    %v1153 = vmax.f32 %v832, 0.0
    %v1154 = vmax.f32 %v834, 0.0
    %v1155 = vmax.f32 %v1025, 0.0
    %v1156 = vmax.f32 %v1027, 0.0
    %1157 = vst [vmem:[#allocation8] sm:$0xff] %v1029
    %1158 = vst [vmem:[#allocation8 + $0x8] sm:$0xff] %v1030
    %1159 = vst [vmem:[#allocation8 + $0x10] sm:$0xff] %v1031
    %1160 = vst [vmem:[#allocation8 + $0x18] sm:$0xff] %v1032
    %1161 = vst [vmem:[#allocation8 + $0x20] sm:$0xff] %v1033
    %1162 = vst [vmem:[#allocation8 + $0x28] sm:$0xff] %v1034
    %1163 = vst [vmem:[#allocation8 + $0x30] sm:$0xff] %v1035
    %1164 = vst [vmem:[#allocation8 + $0x38] sm:$0xff] %v1036
    %1165 = vst [vmem:[#allocation8 + $0x40] sm:$0xff] %v1037
    %1166 = vst [vmem:[#allocation8 + $0x48] sm:$0xff] %v1038
    %1167 = vst [vmem:[#allocation8 + $0x50] sm:$0xff] %v1039
    %1168 = vst [vmem:[#allocation8 + $0x58] sm:$0xff] %v1040
    %1169 = vst [vmem:[#allocation8 + $0x60] sm:$0xff] %v1041
    %1170 = vst [vmem:[#allocation8 + $0x68] sm:$0xff] %v1042
    %1171 = vst [vmem:[#allocation8 + $0x70] sm:$0xff] %v1043
    %1172 = vst [vmem:[#allocation8 + $0x78] sm:$0xff] %v1044
    %1173 = vst [vmem:[#allocation8 + $0x80] sm:$0xff] %v1045
    %1174 = vst [vmem:[#allocation8 + $0x88] sm:$0xff] %v1046
    %1175 = vst [vmem:[#allocation8 + $0x90] sm:$0xff] %v1047
    %1176 = vst [vmem:[#allocation8 + $0x98] sm:$0xff] %v1048
    %1177 = vst [vmem:[#allocation8 + $0xa0] sm:$0xff] %v1049
    %1178 = vst [vmem:[#allocation8 + $0xa8] sm:$0xff] %v1050
    %1179 = vst [vmem:[#allocation8 + $0xb0] sm:$0xff] %v1051
    %1180 = vst [vmem:[#allocation8 + $0xb8] sm:$0xff] %v1052
    %1181 = vst [vmem:[#allocation8 + $0xc0] sm:$0xff] %v1053
    %1182 = vst [vmem:[#allocation8 + $0xc8] sm:$0xff] %v1054
    %1183 = vst [vmem:[#allocation8 + $0xd0] sm:$0xff] %v1055
    %1184 = vst [vmem:[#allocation8 + $0xd8] sm:$0xff] %v1056
    %1185 = vst [vmem:[#allocation8 + $0xe0] sm:$0xff] %v1057
    %1186 = vst [vmem:[#allocation8 + $0xe8] sm:$0xff] %v1058
    %1187 = vst [vmem:[#allocation8 + $0xf0] sm:$0xff] %v1059
    %1188 = vst [vmem:[#allocation8 + $0xf8] sm:$0xff] %v1060
    %1189 = vst [vmem:[#allocation8 + $0x100] sm:$0xff] %v1061
    %1190 = vst [vmem:[#allocation8 + $0x108] sm:$0xff] %v1062
    %1191 = vst [vmem:[#allocation8 + $0x110] sm:$0xff] %v1063
    %1192 = vst [vmem:[#allocation8 + $0x118] sm:$0xff] %v1064
    %1193 = vst [vmem:[#allocation8 + $0x120] sm:$0xff] %v1065
    %1194 = vst [vmem:[#allocation8 + $0x128] sm:$0xff] %v1066
    %1195 = vst [vmem:[#allocation8 + $0x130] sm:$0xff] %v1067
    %1196 = vst [vmem:[#allocation8 + $0x138] sm:$0xff] %v1068
    %1197 = vst [vmem:[#allocation8 + $0x140] sm:$0xff] %v1069
    %1198 = vst [vmem:[#allocation8 + $0x148] sm:$0xff] %v1070
    %1199 = vst [vmem:[#allocation8 + $0x150] sm:$0xff] %v1071
    %1200 = vst [vmem:[#allocation8 + $0x158] sm:$0xff] %v1072
    %1201 = vst [vmem:[#allocation8 + $0x160] sm:$0xff] %v1073
    %1202 = vst [vmem:[#allocation8 + $0x168] sm:$0xff] %v1074
    %1203 = vst [vmem:[#allocation8 + $0x170] sm:$0xff] %v1075
    %1204 = vst [vmem:[#allocation8 + $0x178] sm:$0xff] %v1076
    %1205 = vst [vmem:[#allocation8 + $0x180] sm:$0xff] %v1077
    %1206 = vst [vmem:[#allocation8 + $0x188] sm:$0xff] %v1078
    %1207 = vst [vmem:[#allocation8 + $0x190] sm:$0xff] %v1079
    %1208 = vst [vmem:[#allocation8 + $0x198] sm:$0xff] %v1080
    %1209 = vst [vmem:[#allocation8 + $0x1a0] sm:$0xff] %v1081
    %1210 = vst [vmem:[#allocation8 + $0x1a8] sm:$0xff] %v1082
    %1211 = vst [vmem:[#allocation8 + $0x1b0] sm:$0xff] %v1083
    %1212 = vst [vmem:[#allocation8 + $0x1b8] sm:$0xff] %v1084
    %1213 = vst [vmem:[#allocation8 + $0x1c0] sm:$0xff] %v1085
    %1214 = vst [vmem:[#allocation8 + $0x1c8] sm:$0xff] %v1086
    %1215 = vst [vmem:[#allocation8 + $0x1d0] sm:$0xff] %v1087
    %1216 = vst [vmem:[#allocation8 + $0x1d8] sm:$0xff] %v1088
    %1217 = vst [vmem:[#allocation8 + $0x1e0] sm:$0xff] %v1089
    %1218 = vst [vmem:[#allocation8 + $0x1e8] sm:$0xff] %v1090
    %1219 = vst [vmem:[#allocation8 + $0x1f0] sm:$0xff] %v1091
    %1220 = vst [vmem:[#allocation8 + $0x1f8] sm:$0xff] %v1092
    %1221 = vst [vmem:[#allocation8 + $0x200] sm:$0xff] %v1093
    %1222 = vst [vmem:[#allocation8 + $0x208] sm:$0xff] %v1094
    %1223 = vst [vmem:[#allocation8 + $0x210] sm:$0xff] %v1095
    %1224 = vst [vmem:[#allocation8 + $0x218] sm:$0xff] %v1096
    %1225 = vst [vmem:[#allocation8 + $0x220] sm:$0xff] %v1097
    %1226 = vst [vmem:[#allocation8 + $0x228] sm:$0xff] %v1098
    %1227 = vst [vmem:[#allocation8 + $0x230] sm:$0xff] %v1099
    %1228 = vst [vmem:[#allocation8 + $0x238] sm:$0xff] %v1100
    %1229 = vst [vmem:[#allocation8 + $0x240] sm:$0xff] %v1101
    %1230 = vst [vmem:[#allocation8 + $0x248] sm:$0xff] %v1102
    %1231 = vst [vmem:[#allocation8 + $0x250] sm:$0xff] %v1103
    %1232 = vst [vmem:[#allocation8 + $0x258] sm:$0xff] %v1104
    %1233 = vst [vmem:[#allocation8 + $0x260] sm:$0xff] %v1105
    %1234 = vst [vmem:[#allocation8 + $0x268] sm:$0xff] %v1106
    %1235 = vst [vmem:[#allocation8 + $0x270] sm:$0xff] %v1107
    %1236 = vst [vmem:[#allocation8 + $0x278] sm:$0xff] %v1108
    %1237 = vst [vmem:[#allocation8 + $0x280] sm:$0xff] %v1109
    %1238 = vst [vmem:[#allocation8 + $0x288] sm:$0xff] %v1110
    %1239 = vst [vmem:[#allocation8 + $0x290] sm:$0xff] %v1111
    %1240 = vst [vmem:[#allocation8 + $0x298] sm:$0xff] %v1112
    %1241 = vst [vmem:[#allocation8 + $0x2a0] sm:$0xff] %v1113
    %1242 = vst [vmem:[#allocation8 + $0x2a8] sm:$0xff] %v1114
    %1243 = vst [vmem:[#allocation8 + $0x2b0] sm:$0xff] %v1115
    %1244 = vst [vmem:[#allocation8 + $0x2b8] sm:$0xff] %v1116
    %1245 = vst [vmem:[#allocation8 + $0x2c0] sm:$0xff] %v1117
    %1246 = vst [vmem:[#allocation8 + $0x2c8] sm:$0xff] %v1118
    %1247 = vst [vmem:[#allocation8 + $0x2d0] sm:$0xff] %v1119
    %1248 = vst [vmem:[#allocation8 + $0x2d8] sm:$0xff] %v1120
    %1249 = vst [vmem:[#allocation8 + $0x2e0] sm:$0xff] %v1121
    %1250 = vst [vmem:[#allocation8 + $0x2e8] sm:$0xff] %v1122
    %1251 = vst [vmem:[#allocation8 + $0x2f0] sm:$0xff] %v1123
    %1252 = vst [vmem:[#allocation8 + $0x2f8] sm:$0xff] %v1124
    %1253 = vst [vmem:[#allocation8 + $0x300] sm:$0xff] %v1125
    %1254 = vst [vmem:[#allocation8 + $0x308] sm:$0xff] %v1126
    %1255 = vst [vmem:[#allocation8 + $0x310] sm:$0xff] %v1127
    %1256 = vst [vmem:[#allocation8 + $0x318] sm:$0xff] %v1128
    %1257 = vst [vmem:[#allocation8 + $0x320] sm:$0xff] %v1129
    %1258 = vst [vmem:[#allocation8 + $0x328] sm:$0xff] %v1130
    %1259 = vst [vmem:[#allocation8 + $0x330] sm:$0xff] %v1131
    %1260 = vst [vmem:[#allocation8 + $0x338] sm:$0xff] %v1132
    %1261 = vst [vmem:[#allocation8 + $0x340] sm:$0xff] %v1133
    %1262 = vst [vmem:[#allocation8 + $0x348] sm:$0xff] %v1134
    %1263 = vst [vmem:[#allocation8 + $0x350] sm:$0xff] %v1135
    %1264 = vst [vmem:[#allocation8 + $0x358] sm:$0xff] %v1136
    %1265 = vst [vmem:[#allocation8 + $0x360] sm:$0xff] %v1137
    %1266 = vst [vmem:[#allocation8 + $0x368] sm:$0xff] %v1138
    %1267 = vst [vmem:[#allocation8 + $0x370] sm:$0xff] %v1139
    %1268 = vst [vmem:[#allocation8 + $0x378] sm:$0xff] %v1140
    %1269 = vst [vmem:[#allocation8 + $0x380] sm:$0xff] %v1141
    %1270 = vst [vmem:[#allocation8 + $0x388] sm:$0xff] %v1142
    %1271 = vst [vmem:[#allocation8 + $0x390] sm:$0xff] %v1143
    %1272 = vst [vmem:[#allocation8 + $0x398] sm:$0xff] %v1144
    %1273 = vst [vmem:[#allocation8 + $0x3a0] sm:$0xff] %v1145
    %1274 = vst [vmem:[#allocation8 + $0x3a8] sm:$0xff] %v1146
    %1275 = vst [vmem:[#allocation8 + $0x3b0] sm:$0xff] %v1147
    %1276 = vst [vmem:[#allocation8 + $0x3b8] sm:$0xff] %v1148
    %1277 = vst [vmem:[#allocation8 + $0x3c0] sm:$0xff] %v1149
    %1278 = vst [vmem:[#allocation8 + $0x3c8] sm:$0xff] %v1150
    %1279 = vst [vmem:[#allocation8 + $0x3d0] sm:$0xff] %v1151
    %1280 = vst [vmem:[#allocation8 + $0x3d8] sm:$0xff] %v1152
    %1281 = vst [vmem:[#allocation8 + $0x3e0] sm:$0xff] %v1153
    %1282 = vst [vmem:[#allocation8 + $0x3e8] sm:$0xff] %v1154
    %1283 = vst [vmem:[#allocation8 + $0x3f0] sm:$0xff] %v1155
    %1284 = vst [vmem:[#allocation8 + $0x3f8] sm:$0xff] %v1156
    %v1285 = vpack.c.bf16 %v1033, %v1029
    %v1286 = vpack.c.bf16 %v1034, %v1030
    %v1287 = vpack.c.bf16 %v1035, %v1031
    %v1288 = vpack.c.bf16 %v1036, %v1032
    %v1289 = vpack.c.bf16 %v1041, %v1037
    %v1290 = vpack.c.bf16 %v1042, %v1038
    %v1291 = vpack.c.bf16 %v1043, %v1039
    %v1292 = vpack.c.bf16 %v1044, %v1040
    %v1293 = vpack.c.bf16 %v1049, %v1045
    %v1294 = vpack.c.bf16 %v1050, %v1046
    %v1295 = vpack.c.bf16 %v1051, %v1047
    %v1296 = vpack.c.bf16 %v1052, %v1048
    %v1297 = vpack.c.bf16 %v1057, %v1053
    %v1298 = vpack.c.bf16 %v1058, %v1054
    %v1299 = vpack.c.bf16 %v1059, %v1055
    %v1300 = vpack.c.bf16 %v1060, %v1056
    %v1301 = vpack.c.bf16 %v1065, %v1061
    %v1302 = vpack.c.bf16 %v1066, %v1062
    %v1303 = vpack.c.bf16 %v1067, %v1063
    %v1304 = vpack.c.bf16 %v1068, %v1064
    %v1305 = vpack.c.bf16 %v1073, %v1069
    %v1306 = vpack.c.bf16 %v1074, %v1070
    %v1307 = vpack.c.bf16 %v1075, %v1071
    %v1308 = vpack.c.bf16 %v1076, %v1072
    %v1309 = vpack.c.bf16 %v1081, %v1077
    %v1310 = vpack.c.bf16 %v1082, %v1078
    %v1311 = vpack.c.bf16 %v1083, %v1079
    %v1312 = vpack.c.bf16 %v1084, %v1080
    %v1313 = vpack.c.bf16 %v1089, %v1085
    %v1314 = vpack.c.bf16 %v1090, %v1086
    %v1315 = vpack.c.bf16 %v1091, %v1087
    %v1316 = vpack.c.bf16 %v1092, %v1088
    %v1317 = vpack.c.bf16 %v1097, %v1093
    %v1318 = vpack.c.bf16 %v1098, %v1094
    %v1319 = vpack.c.bf16 %v1099, %v1095
    %v1320 = vpack.c.bf16 %v1100, %v1096
    %v1321 = vpack.c.bf16 %v1105, %v1101
    %v1322 = vpack.c.bf16 %v1106, %v1102
    %v1323 = vpack.c.bf16 %v1107, %v1103
    %v1324 = vpack.c.bf16 %v1108, %v1104
    %v1325 = vpack.c.bf16 %v1113, %v1109
    %v1326 = vpack.c.bf16 %v1114, %v1110
    %v1327 = vpack.c.bf16 %v1115, %v1111
    %v1328 = vpack.c.bf16 %v1116, %v1112
    %v1329 = vpack.c.bf16 %v1121, %v1117
    %v1330 = vpack.c.bf16 %v1122, %v1118
    %v1331 = vpack.c.bf16 %v1123, %v1119
    %v1332 = vpack.c.bf16 %v1124, %v1120
    %v1333 = vpack.c.bf16 %v1129, %v1125
    %v1334 = vpack.c.bf16 %v1130, %v1126
    %v1335 = vpack.c.bf16 %v1131, %v1127
    %v1336 = vpack.c.bf16 %v1132, %v1128
    %v1337 = vpack.c.bf16 %v1137, %v1133
    %v1338 = vpack.c.bf16 %v1138, %v1134
    %v1339 = vpack.c.bf16 %v1139, %v1135
    %v1340 = vpack.c.bf16 %v1140, %v1136
    %v1341 = vpack.c.bf16 %v1145, %v1141
    %v1342 = vpack.c.bf16 %v1146, %v1142
    %v1343 = vpack.c.bf16 %v1147, %v1143
    %v1344 = vpack.c.bf16 %v1148, %v1144
    %v1345 = vpack.c.bf16 %v1153, %v1149
    %v1346 = vpack.c.bf16 %v1154, %v1150
    %v1347 = vpack.c.bf16 %v1155, %v1151
    %v1348 = vpack.c.bf16 %v1156, %v1152
    %v1349 = vld [vmem:[#allocation7] sm:$0xff]
    %v1350 = vld [vmem:[#allocation7 + $0x8] sm:$0xff]
    %v1351 = vld [vmem:[#allocation7 + $0x10] sm:$0xff]
    %v1352 = vld [vmem:[#allocation7 + $0x18] sm:$0xff]
    %v1353 = vld [vmem:[#allocation7 + $0x20] sm:$0xff]
    %v1354 = vld [vmem:[#allocation7 + $0x28] sm:$0xff]
    %v1355 = vld [vmem:[#allocation7 + $0x30] sm:$0xff]
    %v1356 = vld [vmem:[#allocation7 + $0x38] sm:$0xff]
    %v1357 = vld [vmem:[#allocation7 + $0x40] sm:$0xff]
    %v1358 = vld [vmem:[#allocation7 + $0x48] sm:$0xff]
    %v1359 = vld [vmem:[#allocation7 + $0x50] sm:$0xff]
    %v1360 = vld [vmem:[#allocation7 + $0x58] sm:$0xff]
    %v1361 = vld [vmem:[#allocation7 + $0x60] sm:$0xff]
    %v1362 = vld [vmem:[#allocation7 + $0x68] sm:$0xff]
    %v1363 = vld [vmem:[#allocation7 + $0x70] sm:$0xff]
    %v1364 = vld [vmem:[#allocation7 + $0x78] sm:$0xff]
    %v1365 = vld [vmem:[#allocation7 + $0x80] sm:$0xff]
    %v1366 = vld [vmem:[#allocation7 + $0x88] sm:$0xff]
    %v1367 = vld [vmem:[#allocation7 + $0x90] sm:$0xff]
    %v1368 = vld [vmem:[#allocation7 + $0x98] sm:$0xff]
    %v1369 = vld [vmem:[#allocation7 + $0xa0] sm:$0xff]
    %v1370 = vld [vmem:[#allocation7 + $0xa8] sm:$0xff]
    %v1371 = vld [vmem:[#allocation7 + $0xb0] sm:$0xff]
    %v1372 = vld [vmem:[#allocation7 + $0xb8] sm:$0xff]
    %v1373 = vld [vmem:[#allocation7 + $0xc0] sm:$0xff]
    %v1374 = vld [vmem:[#allocation7 + $0xc8] sm:$0xff]
    %v1375 = vld [vmem:[#allocation7 + $0xd0] sm:$0xff]
    %v1376 = vld [vmem:[#allocation7 + $0xd8] sm:$0xff]
    %v1377 = vld [vmem:[#allocation7 + $0xe0] sm:$0xff]
    %v1378 = vld [vmem:[#allocation7 + $0xe8] sm:$0xff]
    %v1379 = vld [vmem:[#allocation7 + $0xf0] sm:$0xff]
    %v1380 = vld [vmem:[#allocation7 + $0xf8] sm:$0xff]
    %v1381 = vld [vmem:[#allocation7 + $0x100] sm:$0xff]
    %v1382 = vld [vmem:[#allocation7 + $0x108] sm:$0xff]
    %v1383 = vld [vmem:[#allocation7 + $0x110] sm:$0xff]
    %v1384 = vld [vmem:[#allocation7 + $0x118] sm:$0xff]
    %v1385 = vld [vmem:[#allocation7 + $0x120] sm:$0xff]
    %v1386 = vld [vmem:[#allocation7 + $0x128] sm:$0xff]
    %v1387 = vld [vmem:[#allocation7 + $0x130] sm:$0xff]
    %v1388 = vld [vmem:[#allocation7 + $0x138] sm:$0xff]
    %v1389 = vld [vmem:[#allocation7 + $0x140] sm:$0xff]
    %v1390 = vld [vmem:[#allocation7 + $0x148] sm:$0xff]
    %v1391 = vld [vmem:[#allocation7 + $0x150] sm:$0xff]
    %v1392 = vld [vmem:[#allocation7 + $0x158] sm:$0xff]
    %v1393 = vld [vmem:[#allocation7 + $0x160] sm:$0xff]
    %v1394 = vld [vmem:[#allocation7 + $0x168] sm:$0xff]
    %v1395 = vld [vmem:[#allocation7 + $0x170] sm:$0xff]
    %v1396 = vld [vmem:[#allocation7 + $0x178] sm:$0xff]
    %v1397 = vld [vmem:[#allocation7 + $0x180] sm:$0xff]
    %v1398 = vld [vmem:[#allocation7 + $0x188] sm:$0xff]
    %v1399 = vld [vmem:[#allocation7 + $0x190] sm:$0xff]
    %v1400 = vld [vmem:[#allocation7 + $0x198] sm:$0xff]
    %v1401 = vld [vmem:[#allocation7 + $0x1a0] sm:$0xff]
    %v1402 = vld [vmem:[#allocation7 + $0x1a8] sm:$0xff]
    %v1403 = vld [vmem:[#allocation7 + $0x1b0] sm:$0xff]
    %v1404 = vld [vmem:[#allocation7 + $0x1b8] sm:$0xff]
    %v1405 = vld [vmem:[#allocation7 + $0x1c0] sm:$0xff]
    %v1406 = vld [vmem:[#allocation7 + $0x1c8] sm:$0xff]
    %v1407 = vld [vmem:[#allocation7 + $0x1d0] sm:$0xff]
    %v1408 = vld [vmem:[#allocation7 + $0x1d8] sm:$0xff]
    %v1409 = vld [vmem:[#allocation7 + $0x1e0] sm:$0xff]
    %v1410 = vld [vmem:[#allocation7 + $0x1e8] sm:$0xff]
    %v1411 = vld [vmem:[#allocation7 + $0x1f0] sm:$0xff]
    %v1412 = vld [vmem:[#allocation7 + $0x1f8] sm:$0xff]
    %v1477 = vunpack.c.l.b16 %v1349
    %v1478 = vunpack.c.h.b16 %v1349
    %v1479 = vunpack.c.l.b16 %v1350
    %v1480 = vunpack.c.h.b16 %v1350
    %v1481 = vunpack.c.l.b16 %v1351
    %v1482 = vunpack.c.h.b16 %v1351
    %v1483 = vunpack.c.l.b16 %v1352
    %v1484 = vunpack.c.h.b16 %v1352
    %v1485 = vunpack.c.l.b16 %v1353
    %v1486 = vunpack.c.h.b16 %v1353
    %v1487 = vunpack.c.l.b16 %v1354
    %v1488 = vunpack.c.h.b16 %v1354
    %v1489 = vunpack.c.l.b16 %v1355
    %v1490 = vunpack.c.h.b16 %v1355
    %v1491 = vunpack.c.l.b16 %v1356
    %v1492 = vunpack.c.h.b16 %v1356
    %v1493 = vunpack.c.l.b16 %v1357
    %v1494 = vunpack.c.h.b16 %v1357
    %v1495 = vunpack.c.l.b16 %v1358
    %v1496 = vunpack.c.h.b16 %v1358
    %v1497 = vunpack.c.l.b16 %v1359
    %v1498 = vunpack.c.h.b16 %v1359
    %v1499 = vunpack.c.l.b16 %v1360
    %v1500 = vunpack.c.h.b16 %v1360
    %v1501 = vunpack.c.l.b16 %v1361
    %v1502 = vunpack.c.h.b16 %v1361
    %v1503 = vunpack.c.l.b16 %v1362
    %v1504 = vunpack.c.h.b16 %v1362
    %v1505 = vunpack.c.l.b16 %v1363
    %v1506 = vunpack.c.h.b16 %v1363
    %v1507 = vunpack.c.l.b16 %v1364
    %v1508 = vunpack.c.h.b16 %v1364
    %v1509 = vunpack.c.l.b16 %v1365
    %v1510 = vunpack.c.h.b16 %v1365
    %v1511 = vunpack.c.l.b16 %v1366
    %v1512 = vunpack.c.h.b16 %v1366
    %v1513 = vunpack.c.l.b16 %v1367
    %v1514 = vunpack.c.h.b16 %v1367
    %v1515 = vunpack.c.l.b16 %v1368
    %v1516 = vunpack.c.h.b16 %v1368
    %v1517 = vunpack.c.l.b16 %v1369
    %v1518 = vunpack.c.h.b16 %v1369
    %v1519 = vunpack.c.l.b16 %v1370
    %v1520 = vunpack.c.h.b16 %v1370
    %v1521 = vunpack.c.l.b16 %v1371
    %v1522 = vunpack.c.h.b16 %v1371
    %v1523 = vunpack.c.l.b16 %v1372
    %v1524 = vunpack.c.h.b16 %v1372
    %v1525 = vunpack.c.l.b16 %v1373
    %v1526 = vunpack.c.h.b16 %v1373
    %v1527 = vunpack.c.l.b16 %v1374
    %v1528 = vunpack.c.h.b16 %v1374
    %v1529 = vunpack.c.l.b16 %v1375
    %v1530 = vunpack.c.h.b16 %v1375
    %v1531 = vunpack.c.l.b16 %v1376
    %v1532 = vunpack.c.h.b16 %v1376
    %v1533 = vunpack.c.l.b16 %v1377
    %v1534 = vunpack.c.h.b16 %v1377
    %v1535 = vunpack.c.l.b16 %v1378
    %v1536 = vunpack.c.h.b16 %v1378
    %v1537 = vunpack.c.l.b16 %v1379
    %v1538 = vunpack.c.h.b16 %v1379
    %v1539 = vunpack.c.l.b16 %v1380
    %v1540 = vunpack.c.h.b16 %v1380
    %v1541 = vunpack.c.l.b16 %v1381
    %v1542 = vunpack.c.h.b16 %v1381
    %v1543 = vunpack.c.l.b16 %v1382
    %v1544 = vunpack.c.h.b16 %v1382
    %v1545 = vunpack.c.l.b16 %v1383
    %v1546 = vunpack.c.h.b16 %v1383
    %v1547 = vunpack.c.l.b16 %v1384
    %v1548 = vunpack.c.h.b16 %v1384
    %v1549 = vunpack.c.l.b16 %v1385
    %v1550 = vunpack.c.h.b16 %v1385
    %v1551 = vunpack.c.l.b16 %v1386
    %v1552 = vunpack.c.h.b16 %v1386
    %v1553 = vunpack.c.l.b16 %v1387
    %v1554 = vunpack.c.h.b16 %v1387
    %v1555 = vunpack.c.l.b16 %v1388
    %v1556 = vunpack.c.h.b16 %v1388
    %v1557 = vunpack.c.l.b16 %v1389
    %v1558 = vunpack.c.h.b16 %v1389
    %v1559 = vunpack.c.l.b16 %v1390
    %v1560 = vunpack.c.h.b16 %v1390
    %v1561 = vunpack.c.l.b16 %v1391
    %v1562 = vunpack.c.h.b16 %v1391
    %v1563 = vunpack.c.l.b16 %v1392
    %v1564 = vunpack.c.h.b16 %v1392
    %v1565 = vunpack.c.l.b16 %v1393
    %v1566 = vunpack.c.h.b16 %v1393
    %v1567 = vunpack.c.l.b16 %v1394
    %v1568 = vunpack.c.h.b16 %v1394
    %v1569 = vunpack.c.l.b16 %v1395
    %v1570 = vunpack.c.h.b16 %v1395
    %v1571 = vunpack.c.l.b16 %v1396
    %v1572 = vunpack.c.h.b16 %v1396
    %v1573 = vunpack.c.l.b16 %v1397
    %v1574 = vunpack.c.h.b16 %v1397
    %v1575 = vunpack.c.l.b16 %v1398
    %v1576 = vunpack.c.h.b16 %v1398
    %v1577 = vunpack.c.l.b16 %v1399
    %v1578 = vunpack.c.h.b16 %v1399
    %v1579 = vunpack.c.l.b16 %v1400
    %v1580 = vunpack.c.h.b16 %v1400
    %v1581 = vunpack.c.l.b16 %v1401
    %v1582 = vunpack.c.h.b16 %v1401
    %v1583 = vunpack.c.l.b16 %v1402
    %v1584 = vunpack.c.h.b16 %v1402
    %v1585 = vunpack.c.l.b16 %v1403
    %v1586 = vunpack.c.h.b16 %v1403
    %v1587 = vunpack.c.l.b16 %v1404
    %v1588 = vunpack.c.h.b16 %v1404
    %v1589 = vunpack.c.l.b16 %v1405
    %v1590 = vunpack.c.h.b16 %v1405
    %v1591 = vunpack.c.l.b16 %v1406
    %v1592 = vunpack.c.h.b16 %v1406
    %v1593 = vunpack.c.l.b16 %v1407
    %v1594 = vunpack.c.h.b16 %v1407
    %v1595 = vunpack.c.l.b16 %v1408
    %v1596 = vunpack.c.h.b16 %v1408
    %v1597 = vunpack.c.l.b16 %v1409
    %v1598 = vunpack.c.h.b16 %v1409
    %v1599 = vunpack.c.l.b16 %v1410
    %v1600 = vunpack.c.h.b16 %v1410
    %v1601 = vunpack.c.l.b16 %v1411
    %v1602 = vunpack.c.h.b16 %v1411
    %v1603 = vunpack.c.l.b16 %v1412
    %v1604 = vunpack.c.h.b16 %v1412
    %v1605 = vpack.c.b16 %v1479, %v1477
    %v1606 = vpack.c.b16 %v1480, %v1478
    %v1607 = vpack.c.b16 %v1483, %v1481
    %v1608 = vpack.c.b16 %v1484, %v1482
    %v1609 = vpack.c.b16 %v1487, %v1485
    %v1610 = vpack.c.b16 %v1488, %v1486
    %v1611 = vpack.c.b16 %v1491, %v1489
    %v1612 = vpack.c.b16 %v1492, %v1490
    %v1613 = vpack.c.b16 %v1495, %v1493
    %v1614 = vpack.c.b16 %v1496, %v1494
    %v1615 = vpack.c.b16 %v1499, %v1497
    %v1616 = vpack.c.b16 %v1500, %v1498
    %v1617 = vpack.c.b16 %v1503, %v1501
    %v1618 = vpack.c.b16 %v1504, %v1502
    %v1619 = vpack.c.b16 %v1507, %v1505
    %v1620 = vpack.c.b16 %v1508, %v1506
    %v1621 = vpack.c.b16 %v1511, %v1509
    %v1622 = vpack.c.b16 %v1512, %v1510
    %v1623 = vpack.c.b16 %v1515, %v1513
    %v1624 = vpack.c.b16 %v1516, %v1514
    %v1625 = vpack.c.b16 %v1519, %v1517
    %v1626 = vpack.c.b16 %v1520, %v1518
    %v1627 = vpack.c.b16 %v1523, %v1521
    %v1628 = vpack.c.b16 %v1524, %v1522
    %v1629 = vpack.c.b16 %v1527, %v1525
    %v1630 = vpack.c.b16 %v1528, %v1526
    %v1631 = vpack.c.b16 %v1531, %v1529
    %v1632 = vpack.c.b16 %v1532, %v1530
    %v1633 = vpack.c.b16 %v1535, %v1533
    %v1634 = vpack.c.b16 %v1536, %v1534
    %v1635 = vpack.c.b16 %v1539, %v1537
    %v1636 = vpack.c.b16 %v1540, %v1538
    %v1637 = vpack.c.b16 %v1543, %v1541
    %v1638 = vpack.c.b16 %v1544, %v1542
    %v1639 = vpack.c.b16 %v1547, %v1545
    %v1640 = vpack.c.b16 %v1548, %v1546
    %v1641 = vpack.c.b16 %v1551, %v1549
    %v1642 = vpack.c.b16 %v1552, %v1550
    %v1643 = vpack.c.b16 %v1555, %v1553
    %v1644 = vpack.c.b16 %v1556, %v1554
    %v1645 = vpack.c.b16 %v1559, %v1557
    %v1646 = vpack.c.b16 %v1560, %v1558
    %v1647 = vpack.c.b16 %v1563, %v1561
    %v1648 = vpack.c.b16 %v1564, %v1562
    %v1649 = vpack.c.b16 %v1567, %v1565
    %v1650 = vpack.c.b16 %v1568, %v1566
    %v1651 = vpack.c.b16 %v1571, %v1569
    %v1652 = vpack.c.b16 %v1572, %v1570
    %v1653 = vpack.c.b16 %v1575, %v1573
    %v1654 = vpack.c.b16 %v1576, %v1574
    %v1655 = vpack.c.b16 %v1579, %v1577
    %v1656 = vpack.c.b16 %v1580, %v1578
    %v1657 = vpack.c.b16 %v1583, %v1581
    %v1658 = vpack.c.b16 %v1584, %v1582
    %v1659 = vpack.c.b16 %v1587, %v1585
    %v1660 = vpack.c.b16 %v1588, %v1586
    %v1661 = vpack.c.b16 %v1591, %v1589
    %v1662 = vpack.c.b16 %v1592, %v1590
    %v1663 = vpack.c.b16 %v1595, %v1593
    %v1664 = vpack.c.b16 %v1596, %v1594
    %v1665 = vpack.c.b16 %v1599, %v1597
    %v1666 = vpack.c.b16 %v1600, %v1598
    %v1667 = vpack.c.b16 %v1603, %v1601
    %v1668 = vpack.c.b16 %v1604, %v1602
    %1733 = vmatprep.subr.bf16.mxu0 %v1606
    %1734 = vmatpush1.bf16.msra.mxu0 %v1605
    %1735 = vmatprep.subr.bf16.mxu0 %v1608
    %1736 = vmatpush1.bf16.msra.mxu0 %v1607
    %1737 = vmatprep.subr.bf16.mxu0 %v1610
    %1738 = vmatpush1.bf16.msra.mxu0 %v1609
    %1739 = vmatprep.subr.bf16.mxu0 %v1612
    %1740 = vmatpush1.bf16.msra.mxu0 %v1611
    %1741 = vmatprep.subr.bf16.mxu0 %v1614
    %1742 = vmatpush1.bf16.msra.mxu0 %v1613
    %1743 = vmatprep.subr.bf16.mxu0 %v1616
    %1744 = vmatpush1.bf16.msra.mxu0 %v1615
    %1745 = vmatprep.subr.bf16.mxu0 %v1618
    %1746 = vmatpush1.bf16.msra.mxu0 %v1617
    %1747 = vmatprep.subr.bf16.mxu0 %v1620
    %1748 = vmatpush1.bf16.msra.mxu0 %v1619
    %1749 = vmatprep.subr.bf16.mxu0 %v1622
    %1750 = vmatpush1.bf16.msra.mxu0 %v1621
    %1751 = vmatprep.subr.bf16.mxu0 %v1624
    %1752 = vmatpush1.bf16.msra.mxu0 %v1623
    %1753 = vmatprep.subr.bf16.mxu0 %v1626
    %1754 = vmatpush1.bf16.msra.mxu0 %v1625
    %1755 = vmatprep.subr.bf16.mxu0 %v1628
    %1756 = vmatpush1.bf16.msra.mxu0 %v1627
    %1757 = vmatprep.subr.bf16.mxu0 %v1630
    %1758 = vmatpush1.bf16.msra.mxu0 %v1629
    %1759 = vmatprep.subr.bf16.mxu0 %v1632
    %1760 = vmatpush1.bf16.msra.mxu0 %v1631
    %1761 = vmatprep.subr.bf16.mxu0 %v1634
    %1762 = vmatpush1.bf16.msra.mxu0 %v1633
    %1763 = vmatprep.subr.bf16.mxu0 %v1636
    %1764 = vmatpush1.bf16.msra.mxu0 %v1635
    %1765 = vmatprep.mubr.bf16.mxu0 %v1286
    %1766 = vmatmul.mubr.bf16.gmra.mrb[0].mxu0 %v1285
    %v1767 = vpop.f32.mrb[0].mxu0
    %v1768 = vadd.f32 %v134, %v1767
    %v1769 = vpop.f32.mrb[0].mxu0
    %v1770 = vadd.f32 %v138, %v1769
    %v1771 = vpop.f32.mrb[0].mxu0
    %v1772 = vadd.f32 %v134, %v1771
    %v1773 = vpop.f32.mrb[0].mxu0
    %v1774 = vadd.f32 %v138, %v1773
    %1775 = vmatprep.mubr.bf16.mxu0 %v1290
    %1776 = vmatmul.mubr.bf16.gmra.mrb[0].mxu0 %v1289
    %v1777 = vpop.f32.mrb[0].mxu0
    %v1778 = vadd.f32 %v134, %v1777
    %v1779 = vpop.f32.mrb[0].mxu0
    %v1780 = vadd.f32 %v138, %v1779
    %v1781 = vpop.f32.mrb[0].mxu0
    %v1782 = vadd.f32 %v134, %v1781
    %v1783 = vpop.f32.mrb[0].mxu0
    %v1784 = vadd.f32 %v138, %v1783
    %1785 = vmatprep.mubr.bf16.mxu0 %v1294
    %1786 = vmatmul.mubr.bf16.gmra.mrb[0].mxu0 %v1293
    %v1787 = vpop.f32.mrb[0].mxu0
    %v1788 = vadd.f32 %v134, %v1787
    %v1789 = vpop.f32.mrb[0].mxu0
    %v1790 = vadd.f32 %v138, %v1789
    %v1791 = vpop.f32.mrb[0].mxu0
    %v1792 = vadd.f32 %v134, %v1791
    %v1793 = vpop.f32.mrb[0].mxu0
    %v1794 = vadd.f32 %v138, %v1793
    %1795 = vmatprep.mubr.bf16.mxu0 %v1298
    %1796 = vmatmul.mubr.bf16.gmra.mrb[0].mxu0 %v1297
    %v1797 = vpop.f32.mrb[0].mxu0
    %v1798 = vadd.f32 %v134, %v1797
    %v1799 = vpop.f32.mrb[0].mxu0
    %v1800 = vadd.f32 %v138, %v1799
    %v1801 = vpop.f32.mrb[0].mxu0
    %v1802 = vadd.f32 %v134, %v1801
    %v1803 = vpop.f32.mrb[0].mxu0
    %v1804 = vadd.f32 %v138, %v1803
    %1805 = vmatprep.mubr.bf16.mxu0 %v1302
    %1806 = vmatmul.mubr.bf16.gmra.mrb[0].mxu0 %v1301
    %v1807 = vpop.f32.mrb[0].mxu0
    %v1808 = vadd.f32 %v134, %v1807
    %v1809 = vpop.f32.mrb[0].mxu0
    %v1810 = vadd.f32 %v138, %v1809
    %v1811 = vpop.f32.mrb[0].mxu0
    %v1812 = vadd.f32 %v134, %v1811
    %v1813 = vpop.f32.mrb[0].mxu0
    %v1814 = vadd.f32 %v138, %v1813
    %1815 = vmatprep.mubr.bf16.mxu0 %v1306
    %1816 = vmatmul.mubr.bf16.gmra.mrb[0].mxu0 %v1305
    %v1817 = vpop.f32.mrb[0].mxu0
    %v1818 = vadd.f32 %v134, %v1817
    %v1819 = vpop.f32.mrb[0].mxu0
    %v1820 = vadd.f32 %v138, %v1819
    %v1821 = vpop.f32.mrb[0].mxu0
    %v1822 = vadd.f32 %v134, %v1821
    %v1823 = vpop.f32.mrb[0].mxu0
    %v1824 = vadd.f32 %v138, %v1823
    %1825 = vmatprep.mubr.bf16.mxu0 %v1310
    %1826 = vmatmul.mubr.bf16.gmra.mrb[0].mxu0 %v1309
    %v1827 = vpop.f32.mrb[0].mxu0
    %v1828 = vadd.f32 %v134, %v1827
    %v1829 = vpop.f32.mrb[0].mxu0
    %v1830 = vadd.f32 %v138, %v1829
    %v1831 = vpop.f32.mrb[0].mxu0
    %v1832 = vadd.f32 %v134, %v1831
    %v1833 = vpop.f32.mrb[0].mxu0
    %v1834 = vadd.f32 %v138, %v1833
    %1835 = vmatprep.mubr.bf16.mxu0 %v1314
    %1836 = vmatmul.mubr.bf16.gmra.mrb[0].mxu0 %v1313
    %v1837 = vpop.f32.mrb[0].mxu0
    %v1838 = vadd.f32 %v134, %v1837
    %v1839 = vpop.f32.mrb[0].mxu0
    %v1840 = vadd.f32 %v138, %v1839
    %v1841 = vpop.f32.mrb[0].mxu0
    %v1842 = vadd.f32 %v134, %v1841
    %v1843 = vpop.f32.mrb[0].mxu0
    %v1844 = vadd.f32 %v138, %v1843
    %1845 = vmatprep.mubr.bf16.mxu0 %v1318
    %1846 = vmatmul.mubr.bf16.gmra.mrb[0].mxu0 %v1317
    %v1847 = vpop.f32.mrb[0].mxu0
    %v1848 = vadd.f32 %v134, %v1847
    %v1849 = vpop.f32.mrb[0].mxu0
    %v1850 = vadd.f32 %v138, %v1849
    %v1851 = vpop.f32.mrb[0].mxu0
    %v1852 = vadd.f32 %v134, %v1851
    %v1853 = vpop.f32.mrb[0].mxu0
    %v1854 = vadd.f32 %v138, %v1853
    %1855 = vmatprep.mubr.bf16.mxu0 %v1322
    %1856 = vmatmul.mubr.bf16.gmra.mrb[0].mxu0 %v1321
    %v1857 = vpop.f32.mrb[0].mxu0
    %v1858 = vadd.f32 %v134, %v1857
    %v1859 = vpop.f32.mrb[0].mxu0
    %v1860 = vadd.f32 %v138, %v1859
    %v1861 = vpop.f32.mrb[0].mxu0
    %v1862 = vadd.f32 %v134, %v1861
    %v1863 = vpop.f32.mrb[0].mxu0
    %v1864 = vadd.f32 %v138, %v1863
    %1865 = vmatprep.mubr.bf16.mxu0 %v1326
    %1866 = vmatmul.mubr.bf16.gmra.mrb[0].mxu0 %v1325
    %v1867 = vpop.f32.mrb[0].mxu0
    %v1868 = vadd.f32 %v134, %v1867
    %v1869 = vpop.f32.mrb[0].mxu0
    %v1870 = vadd.f32 %v138, %v1869
    %v1871 = vpop.f32.mrb[0].mxu0
    %v1872 = vadd.f32 %v134, %v1871
    %v1873 = vpop.f32.mrb[0].mxu0
    %v1874 = vadd.f32 %v138, %v1873
    %1875 = vmatprep.mubr.bf16.mxu0 %v1330
    %1876 = vmatmul.mubr.bf16.gmra.mrb[0].mxu0 %v1329
    %v1877 = vpop.f32.mrb[0].mxu0
    %v1878 = vadd.f32 %v134, %v1877
    %v1879 = vpop.f32.mrb[0].mxu0
    %v1880 = vadd.f32 %v138, %v1879
    %v1881 = vpop.f32.mrb[0].mxu0
    %v1882 = vadd.f32 %v134, %v1881
    %v1883 = vpop.f32.mrb[0].mxu0
    %v1884 = vadd.f32 %v138, %v1883
    %1885 = vmatprep.mubr.bf16.mxu0 %v1334
    %1886 = vmatmul.mubr.bf16.gmra.mrb[0].mxu0 %v1333
    %v1887 = vpop.f32.mrb[0].mxu0
    %v1888 = vadd.f32 %v134, %v1887
    %v1889 = vpop.f32.mrb[0].mxu0
    %v1890 = vadd.f32 %v138, %v1889
    %v1891 = vpop.f32.mrb[0].mxu0
    %v1892 = vadd.f32 %v134, %v1891
    %v1893 = vpop.f32.mrb[0].mxu0
    %v1894 = vadd.f32 %v138, %v1893
    %1895 = vmatprep.mubr.bf16.mxu0 %v1338
    %1896 = vmatmul.mubr.bf16.gmra.mrb[0].mxu0 %v1337
    %v1897 = vpop.f32.mrb[0].mxu0
    %v1898 = vadd.f32 %v134, %v1897
    %v1899 = vpop.f32.mrb[0].mxu0
    %v1900 = vadd.f32 %v138, %v1899
    %v1901 = vpop.f32.mrb[0].mxu0
    %v1902 = vadd.f32 %v134, %v1901
    %v1903 = vpop.f32.mrb[0].mxu0
    %v1904 = vadd.f32 %v138, %v1903
    %1905 = vmatprep.mubr.bf16.mxu0 %v1342
    %1906 = vmatmul.mubr.bf16.gmra.mrb[0].mxu0 %v1341
    %v1907 = vpop.f32.mrb[0].mxu0
    %v1908 = vadd.f32 %v134, %v1907
    %v1909 = vpop.f32.mrb[0].mxu0
    %v1910 = vadd.f32 %v138, %v1909
    %v1911 = vpop.f32.mrb[0].mxu0
    %v1912 = vadd.f32 %v134, %v1911
    %v1913 = vpop.f32.mrb[0].mxu0
    %v1914 = vadd.f32 %v138, %v1913
    %1915 = vmatprep.mubr.bf16.mxu0 %v1346
    %1916 = vmatmul.mubr.bf16.gmra.mrb[0].mxu0 %v1345
    %v1917 = vpop.f32.mrb[0].mxu0
    %v1918 = vadd.f32 %v134, %v1917
    %v1919 = vpop.f32.mrb[0].mxu0
    %v1920 = vadd.f32 %v138, %v1919
    %v1921 = vpop.f32.mrb[0].mxu0
    %v1922 = vadd.f32 %v134, %v1921
    %v1923 = vpop.f32.mrb[0].mxu0
    %v1924 = vadd.f32 %v138, %v1923
    %1925 = vdwg.mxu0
    %1926 = vmatprep.subr.bf16.mxu0 %v1638
    %1927 = vmatpush1.bf16.msra.mxu0 %v1637
    %1928 = vmatprep.subr.bf16.mxu0 %v1640
    %1929 = vmatpush1.bf16.msra.mxu0 %v1639
    %1930 = vmatprep.subr.bf16.mxu0 %v1642
    %1931 = vmatpush1.bf16.msra.mxu0 %v1641
    %1932 = vmatprep.subr.bf16.mxu0 %v1644
    %1933 = vmatpush1.bf16.msra.mxu0 %v1643
    %1934 = vmatprep.subr.bf16.mxu0 %v1646
    %1935 = vmatpush1.bf16.msra.mxu0 %v1645
    %1936 = vmatprep.subr.bf16.mxu0 %v1648
    %1937 = vmatpush1.bf16.msra.mxu0 %v1647
    %1938 = vmatprep.subr.bf16.mxu0 %v1650
    %1939 = vmatpush1.bf16.msra.mxu0 %v1649
    %1940 = vmatprep.subr.bf16.mxu0 %v1652
    %1941 = vmatpush1.bf16.msra.mxu0 %v1651
    %1942 = vmatprep.subr.bf16.mxu0 %v1654
    %1943 = vmatpush1.bf16.msra.mxu0 %v1653
    %1944 = vmatprep.subr.bf16.mxu0 %v1656
    %1945 = vmatpush1.bf16.msra.mxu0 %v1655
    %1946 = vmatprep.subr.bf16.mxu0 %v1658
    %1947 = vmatpush1.bf16.msra.mxu0 %v1657
    %1948 = vmatprep.subr.bf16.mxu0 %v1660
    %1949 = vmatpush1.bf16.msra.mxu0 %v1659
    %1950 = vmatprep.subr.bf16.mxu0 %v1662
    %1951 = vmatpush1.bf16.msra.mxu0 %v1661
    %1952 = vmatprep.subr.bf16.mxu0 %v1664
    %1953 = vmatpush1.bf16.msra.mxu0 %v1663
    %1954 = vmatprep.subr.bf16.mxu0 %v1666
    %1955 = vmatpush1.bf16.msra.mxu0 %v1665
    %1956 = vmatprep.subr.bf16.mxu0 %v1668
    %1957 = vmatpush1.bf16.msra.mxu0 %v1667
    %1958 = vmatprep.mubr.bf16.mxu0 %v1288
    %1959 = vmatmul.mubr.bf16.gmra.mrb[0].mxu0 %v1287
    %v1960 = vpop.f32.mrb[0].mxu0
    %v1961 = vadd.f32 %v1768, %v1960
    %v1962 = vpop.f32.mrb[0].mxu0
    %v1963 = vadd.f32 %v1770, %v1962
    %v1964 = vpop.f32.mrb[0].mxu0
    %v1965 = vadd.f32 %v1772, %v1964
    %v1966 = vpop.f32.mrb[0].mxu0
    %v1967 = vadd.f32 %v1774, %v1966
    %1968 = vmatprep.mubr.bf16.mxu0 %v1292
    %1969 = vmatmul.mubr.bf16.gmra.mrb[0].mxu0 %v1291
    %v1970 = vpop.f32.mrb[0].mxu0
    %v1971 = vadd.f32 %v1778, %v1970
    %v1972 = vpop.f32.mrb[0].mxu0
    %v1973 = vadd.f32 %v1780, %v1972
    %v1974 = vpop.f32.mrb[0].mxu0
    %v1975 = vadd.f32 %v1782, %v1974
    %v1976 = vpop.f32.mrb[0].mxu0
    %v1977 = vadd.f32 %v1784, %v1976
    %1978 = vmatprep.mubr.bf16.mxu0 %v1296
    %1979 = vmatmul.mubr.bf16.gmra.mrb[0].mxu0 %v1295
    %v1980 = vpop.f32.mrb[0].mxu0
    %v1981 = vadd.f32 %v1788, %v1980
    %v1982 = vpop.f32.mrb[0].mxu0
    %v1983 = vadd.f32 %v1790, %v1982
    %v1984 = vpop.f32.mrb[0].mxu0
    %v1985 = vadd.f32 %v1792, %v1984
    %v1986 = vpop.f32.mrb[0].mxu0
    %v1987 = vadd.f32 %v1794, %v1986
    %1988 = vmatprep.mubr.bf16.mxu0 %v1300
    %1989 = vmatmul.mubr.bf16.gmra.mrb[0].mxu0 %v1299
    %v1990 = vpop.f32.mrb[0].mxu0
    %v1991 = vadd.f32 %v1798, %v1990
    %v1992 = vpop.f32.mrb[0].mxu0
    %v1993 = vadd.f32 %v1800, %v1992
    %v1994 = vpop.f32.mrb[0].mxu0
    %v1995 = vadd.f32 %v1802, %v1994
    %v1996 = vpop.f32.mrb[0].mxu0
    %v1997 = vadd.f32 %v1804, %v1996
    %1998 = vmatprep.mubr.bf16.mxu0 %v1304
    %1999 = vmatmul.mubr.bf16.gmra.mrb[0].mxu0 %v1303
    %v2000 = vpop.f32.mrb[0].mxu0
    %v2001 = vadd.f32 %v1808, %v2000
    %v2002 = vpop.f32.mrb[0].mxu0
    %v2003 = vadd.f32 %v1810, %v2002
    %v2004 = vpop.f32.mrb[0].mxu0
    %v2005 = vadd.f32 %v1812, %v2004
    %v2006 = vpop.f32.mrb[0].mxu0
    %v2007 = vadd.f32 %v1814, %v2006
    %2008 = vmatprep.mubr.bf16.mxu0 %v1308
    %2009 = vmatmul.mubr.bf16.gmra.mrb[0].mxu0 %v1307
    %v2010 = vpop.f32.mrb[0].mxu0
    %v2011 = vadd.f32 %v1818, %v2010
    %v2012 = vpop.f32.mrb[0].mxu0
    %v2013 = vadd.f32 %v1820, %v2012
    %v2014 = vpop.f32.mrb[0].mxu0
    %v2015 = vadd.f32 %v1822, %v2014
    %v2016 = vpop.f32.mrb[0].mxu0
    %v2017 = vadd.f32 %v1824, %v2016
    %2018 = vmatprep.mubr.bf16.mxu0 %v1312
    %2019 = vmatmul.mubr.bf16.gmra.mrb[0].mxu0 %v1311
    %v2020 = vpop.f32.mrb[0].mxu0
    %v2021 = vadd.f32 %v1828, %v2020
    %v2022 = vpop.f32.mrb[0].mxu0
    %v2023 = vadd.f32 %v1830, %v2022
    %v2024 = vpop.f32.mrb[0].mxu0
    %v2025 = vadd.f32 %v1832, %v2024
    %v2026 = vpop.f32.mrb[0].mxu0
    %v2027 = vadd.f32 %v1834, %v2026
    %2028 = vmatprep.mubr.bf16.mxu0 %v1316
    %2029 = vmatmul.mubr.bf16.gmra.mrb[0].mxu0 %v1315
    %v2030 = vpop.f32.mrb[0].mxu0
    %v2031 = vadd.f32 %v1838, %v2030
    %v2032 = vpop.f32.mrb[0].mxu0
    %v2033 = vadd.f32 %v1840, %v2032
    %v2034 = vpop.f32.mrb[0].mxu0
    %v2035 = vadd.f32 %v1842, %v2034
    %v2036 = vpop.f32.mrb[0].mxu0
    %v2037 = vadd.f32 %v1844, %v2036
    %2038 = vmatprep.mubr.bf16.mxu0 %v1320
    %2039 = vmatmul.mubr.bf16.gmra.mrb[0].mxu0 %v1319
    %v2040 = vpop.f32.mrb[0].mxu0
    %v2041 = vadd.f32 %v1848, %v2040
    %v2042 = vpop.f32.mrb[0].mxu0
    %v2043 = vadd.f32 %v1850, %v2042
    %v2044 = vpop.f32.mrb[0].mxu0
    %v2045 = vadd.f32 %v1852, %v2044
    %v2046 = vpop.f32.mrb[0].mxu0
    %v2047 = vadd.f32 %v1854, %v2046
    %2048 = vmatprep.mubr.bf16.mxu0 %v1324
    %2049 = vmatmul.mubr.bf16.gmra.mrb[0].mxu0 %v1323
    %v2050 = vpop.f32.mrb[0].mxu0
    %v2051 = vadd.f32 %v1858, %v2050
    %v2052 = vpop.f32.mrb[0].mxu0
    %v2053 = vadd.f32 %v1860, %v2052
    %v2054 = vpop.f32.mrb[0].mxu0
    %v2055 = vadd.f32 %v1862, %v2054
    %v2056 = vpop.f32.mrb[0].mxu0
    %v2057 = vadd.f32 %v1864, %v2056
    %2058 = vmatprep.mubr.bf16.mxu0 %v1328
    %2059 = vmatmul.mubr.bf16.gmra.mrb[0].mxu0 %v1327
    %v2060 = vpop.f32.mrb[0].mxu0
    %v2061 = vadd.f32 %v1868, %v2060
    %v2062 = vpop.f32.mrb[0].mxu0
    %v2063 = vadd.f32 %v1870, %v2062
    %v2064 = vpop.f32.mrb[0].mxu0
    %v2065 = vadd.f32 %v1872, %v2064
    %v2066 = vpop.f32.mrb[0].mxu0
    %v2067 = vadd.f32 %v1874, %v2066
    %2068 = vmatprep.mubr.bf16.mxu0 %v1332
    %2069 = vmatmul.mubr.bf16.gmra.mrb[0].mxu0 %v1331
    %v2070 = vpop.f32.mrb[0].mxu0
    %v2071 = vadd.f32 %v1878, %v2070
    %v2072 = vpop.f32.mrb[0].mxu0
    %v2073 = vadd.f32 %v1880, %v2072
    %v2074 = vpop.f32.mrb[0].mxu0
    %v2075 = vadd.f32 %v1882, %v2074
    %v2076 = vpop.f32.mrb[0].mxu0
    %v2077 = vadd.f32 %v1884, %v2076
    %2078 = vmatprep.mubr.bf16.mxu0 %v1336
    %2079 = vmatmul.mubr.bf16.gmra.mrb[0].mxu0 %v1335
    %v2080 = vpop.f32.mrb[0].mxu0
    %v2081 = vadd.f32 %v1888, %v2080
    %v2082 = vpop.f32.mrb[0].mxu0
    %v2083 = vadd.f32 %v1890, %v2082
    %v2084 = vpop.f32.mrb[0].mxu0
    %v2085 = vadd.f32 %v1892, %v2084
    %v2086 = vpop.f32.mrb[0].mxu0
    %v2087 = vadd.f32 %v1894, %v2086
    %2088 = vmatprep.mubr.bf16.mxu0 %v1340
    %2089 = vmatmul.mubr.bf16.gmra.mrb[0].mxu0 %v1339
    %v2090 = vpop.f32.mrb[0].mxu0
    %v2091 = vadd.f32 %v1898, %v2090
    %v2092 = vpop.f32.mrb[0].mxu0
    %v2093 = vadd.f32 %v1900, %v2092
    %v2094 = vpop.f32.mrb[0].mxu0
    %v2095 = vadd.f32 %v1902, %v2094
    %v2096 = vpop.f32.mrb[0].mxu0
    %v2097 = vadd.f32 %v1904, %v2096
    %2098 = vmatprep.mubr.bf16.mxu0 %v1344
    %2099 = vmatmul.mubr.bf16.gmra.mrb[0].mxu0 %v1343
    %v2100 = vpop.f32.mrb[0].mxu0
    %v2101 = vadd.f32 %v1908, %v2100
    %v2102 = vpop.f32.mrb[0].mxu0
    %v2103 = vadd.f32 %v1910, %v2102
    %v2104 = vpop.f32.mrb[0].mxu0
    %v2105 = vadd.f32 %v1912, %v2104
    %v2106 = vpop.f32.mrb[0].mxu0
    %v2107 = vadd.f32 %v1914, %v2106
    %2108 = vmatprep.mubr.bf16.mxu0 %v1348
    %2109 = vmatmul.mubr.bf16.gmra.mrb[0].mxu0 %v1347
    %v2110 = vpop.f32.mrb[0].mxu0
    %v2111 = vadd.f32 %v1918, %v2110
    %v2112 = vpop.f32.mrb[0].mxu0
    %v2113 = vadd.f32 %v1920, %v2112
    %v2114 = vpop.f32.mrb[0].mxu0
    %v2115 = vadd.f32 %v1922, %v2114
    %v2116 = vpop.f32.mrb[0].mxu0
    %v2117 = vadd.f32 %v1924, %v2116
    %2118 = vdwg.mxu0
    %2119 = vst [vmem:[#allocation9] sm:$0xff] %v1961
    %2120 = vst [vmem:[#allocation9 + $0x8] sm:$0xff] %v1963
    %2121 = vst [vmem:[#allocation9 + $0x10] sm:$0xff] %v1965
    %2122 = vst [vmem:[#allocation9 + $0x18] sm:$0xff] %v1967
    %2123 = vst [vmem:[#allocation9 + $0x20] sm:$0xff] %v1971
    %2124 = vst [vmem:[#allocation9 + $0x28] sm:$0xff] %v1973
    %2125 = vst [vmem:[#allocation9 + $0x30] sm:$0xff] %v1975
    %2126 = vst [vmem:[#allocation9 + $0x38] sm:$0xff] %v1977
    %2127 = vst [vmem:[#allocation9 + $0x40] sm:$0xff] %v1981
    %2128 = vst [vmem:[#allocation9 + $0x48] sm:$0xff] %v1983
    %2129 = vst [vmem:[#allocation9 + $0x50] sm:$0xff] %v1985
    %2130 = vst [vmem:[#allocation9 + $0x58] sm:$0xff] %v1987
    %2131 = vst [vmem:[#allocation9 + $0x60] sm:$0xff] %v1991
    %2132 = vst [vmem:[#allocation9 + $0x68] sm:$0xff] %v1993
    %2133 = vst [vmem:[#allocation9 + $0x70] sm:$0xff] %v1995
    %2134 = vst [vmem:[#allocation9 + $0x78] sm:$0xff] %v1997
    %2135 = vst [vmem:[#allocation9 + $0x80] sm:$0xff] %v2001
    %2136 = vst [vmem:[#allocation9 + $0x88] sm:$0xff] %v2003
    %2137 = vst [vmem:[#allocation9 + $0x90] sm:$0xff] %v2005
    %2138 = vst [vmem:[#allocation9 + $0x98] sm:$0xff] %v2007
    %2139 = vst [vmem:[#allocation9 + $0xa0] sm:$0xff] %v2011
    %2140 = vst [vmem:[#allocation9 + $0xa8] sm:$0xff] %v2013
    %2141 = vst [vmem:[#allocation9 + $0xb0] sm:$0xff] %v2015
    %2142 = vst [vmem:[#allocation9 + $0xb8] sm:$0xff] %v2017
    %2143 = vst [vmem:[#allocation9 + $0xc0] sm:$0xff] %v2021
    %2144 = vst [vmem:[#allocation9 + $0xc8] sm:$0xff] %v2023
    %2145 = vst [vmem:[#allocation9 + $0xd0] sm:$0xff] %v2025
    %2146 = vst [vmem:[#allocation9 + $0xd8] sm:$0xff] %v2027
    %2147 = vst [vmem:[#allocation9 + $0xe0] sm:$0xff] %v2031
    %2148 = vst [vmem:[#allocation9 + $0xe8] sm:$0xff] %v2033
    %2149 = vst [vmem:[#allocation9 + $0xf0] sm:$0xff] %v2035
    %2150 = vst [vmem:[#allocation9 + $0xf8] sm:$0xff] %v2037
    %2151 = vst [vmem:[#allocation9 + $0x100] sm:$0xff] %v2041
    %2152 = vst [vmem:[#allocation9 + $0x108] sm:$0xff] %v2043
    %2153 = vst [vmem:[#allocation9 + $0x110] sm:$0xff] %v2045
    %2154 = vst [vmem:[#allocation9 + $0x118] sm:$0xff] %v2047
    %2155 = vst [vmem:[#allocation9 + $0x120] sm:$0xff] %v2051
    %2156 = vst [vmem:[#allocation9 + $0x128] sm:$0xff] %v2053
    %2157 = vst [vmem:[#allocation9 + $0x130] sm:$0xff] %v2055
    %2158 = vst [vmem:[#allocation9 + $0x138] sm:$0xff] %v2057
    %2159 = vst [vmem:[#allocation9 + $0x140] sm:$0xff] %v2061
    %2160 = vst [vmem:[#allocation9 + $0x148] sm:$0xff] %v2063
    %2161 = vst [vmem:[#allocation9 + $0x150] sm:$0xff] %v2065
    %2162 = vst [vmem:[#allocation9 + $0x158] sm:$0xff] %v2067
    %2163 = vst [vmem:[#allocation9 + $0x160] sm:$0xff] %v2071
    %2164 = vst [vmem:[#allocation9 + $0x168] sm:$0xff] %v2073
    %2165 = vst [vmem:[#allocation9 + $0x170] sm:$0xff] %v2075
    %2166 = vst [vmem:[#allocation9 + $0x178] sm:$0xff] %v2077
    %2167 = vst [vmem:[#allocation9 + $0x180] sm:$0xff] %v2081
    %2168 = vst [vmem:[#allocation9 + $0x188] sm:$0xff] %v2083
    %2169 = vst [vmem:[#allocation9 + $0x190] sm:$0xff] %v2085
    %2170 = vst [vmem:[#allocation9 + $0x198] sm:$0xff] %v2087
    %2171 = vst [vmem:[#allocation9 + $0x1a0] sm:$0xff] %v2091
    %2172 = vst [vmem:[#allocation9 + $0x1a8] sm:$0xff] %v2093
    %2173 = vst [vmem:[#allocation9 + $0x1b0] sm:$0xff] %v2095
    %2174 = vst [vmem:[#allocation9 + $0x1b8] sm:$0xff] %v2097
    %2175 = vst [vmem:[#allocation9 + $0x1c0] sm:$0xff] %v2101
    %2176 = vst [vmem:[#allocation9 + $0x1c8] sm:$0xff] %v2103
    %2177 = vst [vmem:[#allocation9 + $0x1d0] sm:$0xff] %v2105
    %2178 = vst [vmem:[#allocation9 + $0x1d8] sm:$0xff] %v2107
    %2179 = vst [vmem:[#allocation9 + $0x1e0] sm:$0xff] %v2111
    %2180 = vst [vmem:[#allocation9 + $0x1e8] sm:$0xff] %v2113
    %2181 = vst [vmem:[#allocation9 + $0x1f0] sm:$0xff] %v2115
    %2182 = vst [vmem:[#allocation9 + $0x1f8] sm:$0xff] %v2117
    // Predicated region
    $region34: #{tpu_custom_call.1} parent=1 // pred_check
      _
    $region35: #{tpu_custom_call.1} parent=1 // pred_check_branch
      %2184 = sbr.rel (0) target = $region37
    $region36: #{tpu_custom_call.1} parent=1 // pred_region
      %s2186 = ssub.s32 16384, 16384
      %2187 = vsyncadd [#allocation4], %s2186
      %s2188 = sshll.u32 [#allocation8], 4
      %s2189 = int_to_ptr.vmem [resolvable:$true] %s2188
      %2194 = dma.vmem_to_hbm [thread:$0]  %s2189, 16384, %s5, [#allocation4], 512, 512, 32
    $region37: #{tpu_custom_call.1} parent=1 // pred_fallthru
      _
    // Predicated region
    $region38: #{tpu_custom_call.1} parent=1 // pred_check
      _
    $region39: #{tpu_custom_call.1} parent=1 // pred_check_branch
      %2196 = sbr.rel (0) target = $region41
    $region40: #{tpu_custom_call.1} parent=1 // pred_region
      %s2198 = ssub.s32 8192, 8192
      %2199 = vsyncadd [#allocation10], %s2198
      %s2200 = sshll.u32 [#allocation9], 4
      %s2201 = int_to_ptr.vmem [resolvable:$true] %s2200
      %2206 = dma.vmem_to_hbm [thread:$0]  %s2201, 8192, %s6, [#allocation10], 256, 256, 16
    $region41: #{tpu_custom_call.1} parent=1 // pred_fallthru
      _
    // Predicated region
    $region42: #{tpu_custom_call.1} parent=1 // pred_check
      _
    $region43: #{tpu_custom_call.1} parent=1 // pred_check_branch
      %2208 = sbr.rel (0) target = $region45
    $region44: #{tpu_custom_call.1} parent=1 // pred_region
      %2209 = dma.done [#allocation4], 16384
    $region45: #{tpu_custom_call.1} parent=1 // pred_fallthru
      _
    // Predicated region
    $region46: #{tpu_custom_call.1} parent=1 // pred_check
      _
    $region47: #{tpu_custom_call.1} parent=1 // pred_check_branch
      %2211 = sbr.rel (0) target = $region49
    $region48: #{tpu_custom_call.1} parent=1 // pred_region
      %2212 = dma.done [#allocation10], 8192
    $region49: #{tpu_custom_call.1} parent=1 // pred_fallthru
      _
    %2213 = vsyncpa [#allocation3], 1
    %2214 = vsyncpa [#allocation6], 1
    %2215 = vsyncpa [#allocation4], 1
    %2216 = vsyncpa [#allocation10], 1

</llo_original>
